<compile_context>
chip_gen: v7x
topology: tpu7x:2x2x1
jax: 0.10.0
libtpu: 0.0.40
codegen_flags: <defaults>
</compile_context>

<pallas_src>
import jax
import jax.numpy as jnp
import numpy as np
from jax.experimental import pallas as pl
from jax.experimental.pallas import tpu as pltpu


def _round_up(x, m):
    return ((x + m - 1) // m) * m


def _pick_samples_per_block(n, per_sample_bytes, resident_bytes, budget_bytes):
    """Largest divisor of n whose double-buffered streamed footprint fits the VMEM budget."""
    divisors = [d for d in range(1, n + 1) if n % d == 0]
    fitting = [d for d in divisors
               if resident_bytes + 2 * d * per_sample_bytes <= budget_bytes]
    return max(fitting) if fitting else 1


# ---------------------------------------------------------------------------
# Fused Pallas kernel: full MLP, `nb` samples per grid step
# ---------------------------------------------------------------------------
def _make_fused_kernel(num_layers, nb, b_pad, in_dim_pad):
    def kernel(x_ref, *refs):
        o_ref = refs[-1]
        lrefs = refs[:-1]                                   # 4 refs per layer
        x = x_ref[...]                                      # (B_pad, I0_pad) f32
        h = None                                            # (nb, B_pad, D) f32
        for li in range(num_layers):
            wmu, bmu, epsw, epsb = lrefs[4 * li:4 * li + 4]
            o_dim = wmu.shape[0]

            if li == 0:
                # mu part is sample-invariant for layer 0 (activations == broadcast x):
                # compute it once and broadcast (cheap, stays in vregs).
                mu2d = jnp.einsum("bi,oi->bo", x, wmu[...],
                                  preferred_element_type=jnp.float32)       # (B, O)
                mu = jnp.broadcast_to(mu2d[None], (nb, b_pad, o_dim))
                h_bf16 = jnp.broadcast_to(x.astype(jnp.bfloat16)[None],
                                          (nb, b_pad, in_dim_pad))
            else:
                # Fold samples into the row dim: one (nb*B_pad, I) x (I, O) matmul
                # instead of nb batched 8/16-row matmuls.
                i_dim = h.shape[-1]
                mu = jnp.einsum("mi,oi->mo", h.reshape(nb * b_pad, i_dim), wmu[...],
                                preferred_element_type=jnp.float32)
                mu = mu.reshape(nb, b_pad, o_dim)
                h_bf16 = h.astype(jnp.bfloat16)

            # Per-sample noise term: eps_scaled = sigma*eps was precomputed in the wrapper
            # (bf16), so the "sampling" is just an extra batched matmul on the idle MXU.
            noise = jnp.einsum("nbi,noi->nbo", h_bf16, epsw[...],
                               preferred_element_type=jnp.float32)          # (nb, B, O)

            b = bmu[...][None] + epsb[...]                                  # (nb, 1, O)
            h = mu + noise + b
            if li < num_layers - 1:
                h = jnp.maximum(h, 0.0)                                     # ReLU on hidden
        o_ref[...] = h.astype(o_ref.dtype)

    return kernel


# ---------------------------------------------------------------------------
# Full MFVI forward (single fused pallas_call + JAX glue for padding / scaling)
# ---------------------------------------------------------------------------
def mfvi_forward(x, params, eps_list, head=0, samples_per_block=None,
                 vmem_limit_bytes=48 * 1024 * 1024,
                 vmem_budget_bytes=40 * 1024 * 1024):
    """x: (B, input_dim). eps_list: per layer (eps_w (N,O,I), eps_b (N,1,O)).

    Returns (N, B, output_dim) float32 == torch forward with the same eps
    (up to bf16 rounding of the sigma*eps_w noise term fed to the MXU).
    """
    layers = list(params["hidden"]) + [params["output"][head]]
    num_layers = len(layers)
    N = eps_list[0][0].shape[0]
    B, I0 = x.shape

    # --- lane/sublane-friendly padded shapes ---------------------------------
    B_pad = _round_up(B, 16)                                 # bf16-friendly sublanes
    dims = [I0] + [p["w_mu"].shape[0] for p in layers]       # chained feature dims
    dims_pad = [_round_up(d, 128) for d in dims]

    # --- VMEM-budget-aware sample blocking ------------------------------------
    resident = B_pad * dims_pad[0] * 4                       # x (f32, resident)
    per_sample = B_pad * dims_pad[-1] * 4                    # output block (double-buffered)
    for li in range(num_layers):
        Ip, Op = dims_pad[li], dims_pad[li + 1]
        resident += Op * Ip * 4 + Op * 4                     # w_mu + b_mu (f32, resident)
        per_sample += Op * Ip * 2 + Op * 4                   # eps_w (bf16) + eps_b (f32)
    if samples_per_block is None:
        nb = _pick_samples_per_block(N, per_sample, resident, vmem_budget_bytes)
    else:
        nb = samples_per_block
    assert N % nb == 0, "samples_per_block must divide the number of samples"

    x_p = jnp.zeros((B_pad, dims_pad[0]), jnp.float32).at[:B, :I0].set(
        x.astype(jnp.float32))

    inputs = [x_p]
    in_specs = [pl.BlockSpec((B_pad, dims_pad[0]), lambda n: (0, 0))]

    for li, p in enumerate(layers):
        I, O = dims[li], dims[li + 1]
        Ip, Op = dims_pad[li], dims_pad[li + 1]

        w_mu_p = jnp.zeros((Op, Ip), jnp.float32).at[:O, :I].set(p["w_mu"])
        b_mu_p = jnp.zeros((1, Op), jnp.float32).at[:, :O].set(p["b_mu"])

        # Pre-scale eps by sigma (sample-invariant sigma hoisted out of the kernel);
        # padded entries are exactly zero so they contribute nothing to real outputs.
        w_sig = jnp.exp(0.5 * p["w_logvar"])                 # (O, I)
        b_sig = jnp.exp(0.5 * p["b_logvar"])                 # (1, O)
        eps_w, eps_b = eps_list[li]
        eps_w_s = jnp.zeros((N, Op, Ip), jnp.bfloat16).at[:, :O, :I].set(
            (w_sig[None] * eps_w).astype(jnp.bfloat16))      # bf16: half HBM / VMEM bytes
        eps_b_s = jnp.zeros((N, 1, Op), jnp.float32).at[:, :, :O].set(
            b_sig[None] * eps_b)

        inputs += [w_mu_p, b_mu_p, eps_w_s, eps_b_s]
        in_specs += [
            pl.BlockSpec((Op, Ip), lambda n: (0, 0)),          # w_mu   (resident)
            pl.BlockSpec((1, Op), lambda n: (0, 0)),           # b_mu   (resident)
            pl.BlockSpec((nb, Op, Ip), lambda n: (n, 0, 0)),   # sigma*eps_w (bf16 stream)
            pl.BlockSpec((nb, 1, Op), lambda n: (n, 0, 0)),    # sigma*eps_b (f32 stream)
        ]

    kernel = _make_fused_kernel(num_layers, nb, B_pad, dims_pad[0])

    out = pl.pallas_call(
        kernel,
        out_shape=jax.ShapeDtypeStruct((N, B_pad, dims_pad[-1]), jnp.float32),
        grid_spec=pltpu.PrefetchScalarGridSpec(
            num_scalar_prefetch=0,
            grid=(N // nb,),
            in_specs=in_specs,
            out_specs=pl.BlockSpec((nb, B_pad, dims_pad[-1]), lambda n: (n, 0, 0)),
        ),
        compiler_params=pltpu.CompilerParams(
            dimension_semantics=("parallel",),   # v7x: sample blocks split across TCs
            vmem_limit_bytes=vmem_limit_bytes,   # v5e default scoped limit is 16 MiB
        ),
    )(*inputs)

    return out[:, :B, :dims[-1]]


# ---------------------------------------------------------------------------
# Parameter construction (deterministic, mirrors MFVI.__init__/reset_parameters)
# ---------------------------------------------------------------------------
def init_mfvi_params(key, input_dim, hidden_dims, output_dim, num_heads=1):
    def init_layer(k, in_dim, out_dim):
        k1, k2 = jax.random.split(k)
        w_mu = 0.1 * jax.random.truncated_normal(k1, -2.0, 2.0, (out_dim, in_dim),
                                                 jnp.float32)
        b_mu = 0.1 * jax.random.truncated_normal(k2, -2.0, 2.0, (1, out_dim),
                                                 jnp.float32)
        w_logvar = jnp.full((out_dim, in_dim), -6.0, jnp.float32)
        b_logvar = jnp.full((1, out_dim), -6.0, jnp.float32)
        return dict(w_mu=w_mu, w_logvar=w_logvar, b_mu=b_mu, b_logvar=b_logvar)

    params = {"hidden": [], "output": []}
    last = input_dim
    for hs in hidden_dims:
        key, sub = jax.random.split(key)
        params["hidden"].append(init_layer(sub, last, hs))
        last = hs
    for _ in range(num_heads):
        key, sub = jax.random.split(key)
        params["output"].append(init_layer(sub, last, output_dim))
    return params


# ---------------------------------------------------------------------------
# Pure-JAX f32 reference of the same forward (for correctness checking)
# ---------------------------------------------------------------------------
def mfvi_forward_ref(x, params, eps_list, head=0):
    N = eps_list[0][0].shape[0]
    B, I = x.shape
    h = jnp.broadcast_to(x[None], (N, B, I))
    layers = list(params["hidden"]) + [params["output"][head]]
    for li, (p, (eps_w, eps_b)) in enumerate(zip(layers, eps_list)):
        w = p["w_mu"][None] + jnp.exp(0.5 * p["w_logvar"])[None] * eps_w   # (N, O, I)
        b = p["b_mu"][None] + jnp.exp(0.5 * p["b_logvar"])[None] * eps_b   # (N, 1, O)
        h = jnp.einsum("nbi,noi->nbo", h, w) + b
        if li < len(layers) - 1:
            h = jnp.maximum(h, 0.0)
    return h


def prepare_logits(y_pred, num_samples):
    """Mirror of MFVI._prepare_logits (plain JAX glue)."""
    y_log_softmax = jax.nn.log_softmax(y_pred, axis=-1)
    return (jax.scipy.special.logsumexp(y_log_softmax, axis=0)
            - jnp.log(jnp.float32(num_samples)))


# ---------------------------------------------------------------------------
if __name__ == "__main__":
    # Small shapes consistent with the module: MLP on flat features.
    input_dim, hidden_dims, output_dim = 16, [32, 32], 8
    batch, num_samples = 8, 4
    deterministic = False

    key = jax.random.PRNGKey(0)
    key, pk, xk = jax.random.split(key, 3)

    params = init_mfvi_params(pk, input_dim, hidden_dims, output_dim, num_heads=1)
    x = jax.random.normal(xk, (batch, input_dim), jnp.float32)

    # Reparameterization noise, shared by kernel and reference.
    layer_dims = []
    last = input_dim
    for hs in hidden_dims:
        layer_dims.append((last, hs))
        last = hs
    layer_dims.append((last, output_dim))

    N = 1 if deterministic else num_samples
    eps_list = []
    for (i_dim, o_dim) in layer_dims:
        if deterministic:
            eps_w = jnp.zeros((N, o_dim, i_dim), jnp.float32)
            eps_b = jnp.zeros((N, 1, o_dim), jnp.float32)
        else:
            key, k1, k2 = jax.random.split(key, 3)
            eps_w = jax.random.normal(k1, (N, o_dim, i_dim), jnp.float32)
            eps_b = jax.random.normal(k2, (N, 1, o_dim), jnp.float32)
        eps_list.append((eps_w, eps_b))

    # Fused Pallas forward
    y = mfvi_forward(x, params, eps_list, head=0)
    y = jax.block_until_ready(y)
    assert y.shape == (N, batch, output_dim)

    # Reference check (noise term goes through the MXU in bf16 -> loosened tolerance).
    y_ref = mfvi_forward_ref(x, params, eps_list, head=0)
    np.testing.assert_allclose(np.asarray(y), np.asarray(y_ref), rtol=1e-2, atol=1e-2)

    # Downstream log-prob head (glue, like MFVI._prepare_logits)
    logits = jax.block_until_ready(prepare_logits(y, N))
    assert logits.shape == (batch, output_dim)

    print("KERNEL_OK")
</pallas_src>

<mosaic_0001>
module attributes {stable_mosaic.version = 11 : i64} {
  func.func @kernel(%arg0: i32, %arg1: memref<16x128xf32, #tpu.memory_space<vmem>>, %arg2: memref<128x128xf32, #tpu.memory_space<vmem>>, %arg3: memref<1x128xf32, #tpu.memory_space<vmem>>, %arg4: memref<4x128x128xbf16, #tpu.memory_space<vmem>>, %arg5: memref<4x1x128xf32, #tpu.memory_space<vmem>>, %arg6: memref<128x128xf32, #tpu.memory_space<vmem>>, %arg7: memref<1x128xf32, #tpu.memory_space<vmem>>, %arg8: memref<4x128x128xbf16, #tpu.memory_space<vmem>>, %arg9: memref<4x1x128xf32, #tpu.memory_space<vmem>>, %arg10: memref<128x128xf32, #tpu.memory_space<vmem>>, %arg11: memref<1x128xf32, #tpu.memory_space<vmem>>, %arg12: memref<4x128x128xbf16, #tpu.memory_space<vmem>>, %arg13: memref<4x1x128xf32, #tpu.memory_space<vmem>>, %arg14: memref<4x16x128xf32, #tpu.memory_space<vmem>>) attributes {dimension_semantics = [#tpu.dimension_semantics<parallel>], iteration_bounds = array<i64: 1>, scalar_prefetch = 0 : i64, scratch_operands = 0 : i64, tpu.core_type = #tpu.core_type<tc>, window_params = [{pipeline_mode = #tpu.pipeline_mode<synchronous>, transform_indices = @transform_0, window_bounds = array<i64: 16, 128>}, {pipeline_mode = #tpu.pipeline_mode<synchronous>, transform_indices = @transform_1, window_bounds = array<i64: 128, 128>}, {pipeline_mode = #tpu.pipeline_mode<synchronous>, transform_indices = @transform_2, window_bounds = array<i64: 1, 128>}, {transform_indices = @transform_3, window_bounds = array<i64: 4, 128, 128>}, {transform_indices = @transform_4, window_bounds = array<i64: 4, 1, 128>}, {pipeline_mode = #tpu.pipeline_mode<synchronous>, transform_indices = @transform_5, window_bounds = array<i64: 128, 128>}, {pipeline_mode = #tpu.pipeline_mode<synchronous>, transform_indices = @transform_6, window_bounds = array<i64: 1, 128>}, {transform_indices = @transform_7, window_bounds = array<i64: 4, 128, 128>}, {transform_indices = @transform_8, window_bounds = array<i64: 4, 1, 128>}, {pipeline_mode = #tpu.pipeline_mode<synchronous>, transform_indices = @transform_9, window_bounds = array<i64: 128, 128>}, {pipeline_mode = #tpu.pipeline_mode<synchronous>, transform_indices = @transform_10, window_bounds = array<i64: 1, 128>}, {transform_indices = @transform_11, window_bounds = array<i64: 4, 128, 128>}, {transform_indices = @transform_12, window_bounds = array<i64: 4, 1, 128>}, {transform_indices = @transform_13, window_bounds = array<i64: 4, 16, 128>}]} {
    %c0 = arith.constant 0 : index
    %c0_0 = arith.constant 0 : index
    %0 = vector.load %arg1[%c0, %c0_0] : memref<16x128xf32, #tpu.memory_space<vmem>>, vector<16x128xf32>
    %c0_1 = arith.constant 0 : index
    %c0_2 = arith.constant 0 : index
    %1 = vector.load %arg2[%c0_1, %c0_2] : memref<128x128xf32, #tpu.memory_space<vmem>>, vector<128x128xf32>
    "tpu.trace_start"() <{level = 10 : i32, message = "bi,oi->bo"}> : () -> ()
    %cst = arith.constant dense<0.000000e+00> : vector<16x128xf32>
    %2 = tpu.matmul %0, %1, %cst {dimension_numbers = #tpu.dot_dimension_numbers<[1], [1], [0], [0], [0, 0, 1, 0], [], []>} : vector<16x128xf32>, vector<128x128xf32>, vector<16x128xf32> -> vector<16x128xf32>
    "tpu.trace_stop"() : () -> ()
    %3 = vector.shape_cast %2 : vector<16x128xf32> to vector<1x16x128xf32>
    %4 = vector.shape_cast %3 : vector<1x16x128xf32> to vector<1x16x128xf32>
    %5 = vector.broadcast %4 : vector<1x16x128xf32> to vector<4x16x128xf32>
    %6 = arith.truncf %0 : vector<16x128xf32> to vector<16x128xbf16>
    %7 = vector.shape_cast %6 : vector<16x128xbf16> to vector<1x16x128xbf16>
    %8 = vector.shape_cast %7 : vector<1x16x128xbf16> to vector<1x16x128xbf16>
    %9 = vector.broadcast %8 : vector<1x16x128xbf16> to vector<4x16x128xbf16>
    %c0_3 = arith.constant 0 : index
    %c0_4 = arith.constant 0 : index
    %c0_5 = arith.constant 0 : index
    %10 = vector.load %arg4[%c0_3, %c0_4, %c0_5] : memref<4x128x128xbf16, #tpu.memory_space<vmem>>, vector<4x128x128xbf16>
    "tpu.trace_start"() <{level = 10 : i32, message = "nbi,noi->nbo"}> : () -> ()
    %cst_6 = arith.constant dense<0.000000e+00> : vector<4x16x128xf32>
    %11 = tpu.matmul %9, %10, %cst_6 {dimension_numbers = #tpu.dot_dimension_numbers<[2], [2], [1], [1], [0, 0, 0, 1, 1, 1], [0], [0]>} : vector<4x16x128xbf16>, vector<4x128x128xbf16>, vector<4x16x128xf32> -> vector<4x16x128xf32>
    "tpu.trace_stop"() : () -> ()
    %c0_7 = arith.constant 0 : index
    %c0_8 = arith.constant 0 : index
    %12 = vector.load %arg3[%c0_7, %c0_8] : memref<1x128xf32, #tpu.memory_space<vmem>>, vector<1x128xf32>
    %13 = vector.shape_cast %12 : vector<1x128xf32> to vector<1x1x128xf32>
    %c0_9 = arith.constant 0 : index
    %c0_10 = arith.constant 0 : index
    %c0_11 = arith.constant 0 : index
    %14 = vector.load %arg5[%c0_9, %c0_10, %c0_11] : memref<4x1x128xf32, #tpu.memory_space<vmem>>, vector<4x1x128xf32>
    %15 = vector.broadcast %13 : vector<1x1x128xf32> to vector<4x1x128xf32>
    %16 = arith.addf %15, %14 : vector<4x1x128xf32>
    %17 = arith.addf %5, %11 : vector<4x16x128xf32>
    %18 = vector.broadcast %16 : vector<4x1x128xf32> to vector<4x16x128xf32>
    %19 = arith.addf %17, %18 : vector<4x16x128xf32>
    %cst_12 = arith.constant 0.000000e+00 : f32
    %20 = vector.broadcast %cst_12 : f32 to vector<4x16x128xf32>
    %21 = arith.maximumf %19, %20 : vector<4x16x128xf32>
    %22 = vector.shape_cast %21 : vector<4x16x128xf32> to vector<64x128xf32>
    %c0_13 = arith.constant 0 : index
    %c0_14 = arith.constant 0 : index
    %23 = vector.load %arg6[%c0_13, %c0_14] : memref<128x128xf32, #tpu.memory_space<vmem>>, vector<128x128xf32>
    "tpu.trace_start"() <{level = 10 : i32, message = "mi,oi->mo"}> : () -> ()
    %cst_15 = arith.constant dense<0.000000e+00> : vector<64x128xf32>
    %24 = tpu.matmul %22, %23, %cst_15 {dimension_numbers = #tpu.dot_dimension_numbers<[1], [1], [0], [0], [0, 0, 1, 0], [], []>} : vector<64x128xf32>, vector<128x128xf32>, vector<64x128xf32> -> vector<64x128xf32>
    "tpu.trace_stop"() : () -> ()
    %25 = vector.shape_cast %24 : vector<64x128xf32> to vector<4x16x128xf32>
    %26 = arith.truncf %21 : vector<4x16x128xf32> to vector<4x16x128xbf16>
    %c0_16 = arith.constant 0 : index
    %c0_17 = arith.constant 0 : index
    %c0_18 = arith.constant 0 : index
    %27 = vector.load %arg8[%c0_16, %c0_17, %c0_18] : memref<4x128x128xbf16, #tpu.memory_space<vmem>>, vector<4x128x128xbf16>
    "tpu.trace_start"() <{level = 10 : i32, message = "nbi,noi->nbo"}> : () -> ()
    %cst_19 = arith.constant dense<0.000000e+00> : vector<4x16x128xf32>
    %28 = tpu.matmul %26, %27, %cst_19 {dimension_numbers = #tpu.dot_dimension_numbers<[2], [2], [1], [1], [0, 0, 0, 1, 1, 1], [0], [0]>} : vector<4x16x128xbf16>, vector<4x128x128xbf16>, vector<4x16x128xf32> -> vector<4x16x128xf32>
    "tpu.trace_stop"() : () -> ()
    %c0_20 = arith.constant 0 : index
    %c0_21 = arith.constant 0 : index
    %29 = vector.load %arg7[%c0_20, %c0_21] : memref<1x128xf32, #tpu.memory_space<vmem>>, vector<1x128xf32>
    %30 = vector.shape_cast %29 : vector<1x128xf32> to vector<1x1x128xf32>
    %c0_22 = arith.constant 0 : index
    %c0_23 = arith.constant 0 : index
    %c0_24 = arith.constant 0 : index
    %31 = vector.load %arg9[%c0_22, %c0_23, %c0_24] : memref<4x1x128xf32, #tpu.memory_space<vmem>>, vector<4x1x128xf32>
    %32 = vector.broadcast %30 : vector<1x1x128xf32> to vector<4x1x128xf32>
    %33 = arith.addf %32, %31 : vector<4x1x128xf32>
    %34 = arith.addf %25, %28 : vector<4x16x128xf32>
    %35 = vector.broadcast %33 : vector<4x1x128xf32> to vector<4x16x128xf32>
    %36 = arith.addf %34, %35 : vector<4x16x128xf32>
    %cst_25 = arith.constant 0.000000e+00 : f32
    %37 = vector.broadcast %cst_25 : f32 to vector<4x16x128xf32>
    %38 = arith.maximumf %36, %37 : vector<4x16x128xf32>
    %39 = vector.shape_cast %38 : vector<4x16x128xf32> to vector<64x128xf32>
    %c0_26 = arith.constant 0 : index
    %c0_27 = arith.constant 0 : index
    %40 = vector.load %arg10[%c0_26, %c0_27] : memref<128x128xf32, #tpu.memory_space<vmem>>, vector<128x128xf32>
    "tpu.trace_start"() <{level = 10 : i32, message = "mi,oi->mo"}> : () -> ()
    %cst_28 = arith.constant dense<0.000000e+00> : vector<64x128xf32>
    %41 = tpu.matmul %39, %40, %cst_28 {dimension_numbers = #tpu.dot_dimension_numbers<[1], [1], [0], [0], [0, 0, 1, 0], [], []>} : vector<64x128xf32>, vector<128x128xf32>, vector<64x128xf32> -> vector<64x128xf32>
    "tpu.trace_stop"() : () -> ()
    %42 = vector.shape_cast %41 : vector<64x128xf32> to vector<4x16x128xf32>
    %43 = arith.truncf %38 : vector<4x16x128xf32> to vector<4x16x128xbf16>
    %c0_29 = arith.constant 0 : index
    %c0_30 = arith.constant 0 : index
    %c0_31 = arith.constant 0 : index
    %44 = vector.load %arg12[%c0_29, %c0_30, %c0_31] : memref<4x128x128xbf16, #tpu.memory_space<vmem>>, vector<4x128x128xbf16>
    "tpu.trace_start"() <{level = 10 : i32, message = "nbi,noi->nbo"}> : () -> ()
    %cst_32 = arith.constant dense<0.000000e+00> : vector<4x16x128xf32>
    %45 = tpu.matmul %43, %44, %cst_32 {dimension_numbers = #tpu.dot_dimension_numbers<[2], [2], [1], [1], [0, 0, 0, 1, 1, 1], [0], [0]>} : vector<4x16x128xbf16>, vector<4x128x128xbf16>, vector<4x16x128xf32> -> vector<4x16x128xf32>
    "tpu.trace_stop"() : () -> ()
    %c0_33 = arith.constant 0 : index
    %c0_34 = arith.constant 0 : index
    %46 = vector.load %arg11[%c0_33, %c0_34] : memref<1x128xf32, #tpu.memory_space<vmem>>, vector<1x128xf32>
    %47 = vector.shape_cast %46 : vector<1x128xf32> to vector<1x1x128xf32>
    %c0_35 = arith.constant 0 : index
    %c0_36 = arith.constant 0 : index
    %c0_37 = arith.constant 0 : index
    %48 = vector.load %arg13[%c0_35, %c0_36, %c0_37] : memref<4x1x128xf32, #tpu.memory_space<vmem>>, vector<4x1x128xf32>
    %49 = vector.broadcast %47 : vector<1x1x128xf32> to vector<4x1x128xf32>
    %50 = arith.addf %49, %48 : vector<4x1x128xf32>
    %51 = arith.addf %42, %45 : vector<4x16x128xf32>
    %52 = vector.broadcast %50 : vector<4x1x128xf32> to vector<4x16x128xf32>
    %53 = arith.addf %51, %52 : vector<4x16x128xf32>
    %c0_38 = arith.constant 0 : index
    %c0_39 = arith.constant 0 : index
    %c0_40 = arith.constant 0 : index
    %54 = vector.load %arg14[%c0_38, %c0_39, %c0_40] : memref<4x16x128xf32, #tpu.memory_space<vmem>>, vector<4x16x128xf32>
    tpu.vector_store %arg14[%c0_38, %c0_39, %c0_40], %53 {strides = array<i32>} : memref<4x16x128xf32, #tpu.memory_space<vmem>>, vector<4x16x128xf32>,
    return
  }
  func.func @transform_0(%arg0: i32) -> (i32, i32) {
    %c0_i32 = arith.constant 0 : i32
    %c0_i32_0 = arith.constant 0 : i32
    %c0_i32_1 = arith.constant 0 : i32
    return %c0_i32, %c0_i32_0 : i32, i32
  }
  func.func @transform_1(%arg0: i32) -> (i32, i32) {
    %c0_i32 = arith.constant 0 : i32
    %c0_i32_0 = arith.constant 0 : i32
    %c0_i32_1 = arith.constant 0 : i32
    return %c0_i32, %c0_i32_0 : i32, i32
  }
  func.func @transform_2(%arg0: i32) -> (i32, i32) {
    %c0_i32 = arith.constant 0 : i32
    %c0_i32_0 = arith.constant 0 : i32
    %c0_i32_1 = arith.constant 0 : i32
    return %c0_i32, %c0_i32_0 : i32, i32
  }
  func.func @transform_3(%arg0: i32) -> (i32, i32, i32) {
    %c0_i32 = arith.constant 0 : i32
    %c0_i32_0 = arith.constant 0 : i32
    %c0_i32_1 = arith.constant 0 : i32
    return %arg0, %c0_i32, %c0_i32_0 : i32, i32, i32
  }
  func.func @transform_4(%arg0: i32) -> (i32, i32, i32) {
    %c0_i32 = arith.constant 0 : i32
    %c0_i32_0 = arith.constant 0 : i32
    %c0_i32_1 = arith.constant 0 : i32
    return %arg0, %c0_i32, %c0_i32_0 : i32, i32, i32
  }
  func.func @transform_5(%arg0: i32) -> (i32, i32) {
    %c0_i32 = arith.constant 0 : i32
    %c0_i32_0 = arith.constant 0 : i32
    %c0_i32_1 = arith.constant 0 : i32
    return %c0_i32, %c0_i32_0 : i32, i32
  }
  func.func @transform_6(%arg0: i32) -> (i32, i32) {
    %c0_i32 = arith.constant 0 : i32
    %c0_i32_0 = arith.constant 0 : i32
    %c0_i32_1 = arith.constant 0 : i32
    return %c0_i32, %c0_i32_0 : i32, i32
  }
  func.func @transform_7(%arg0: i32) -> (i32, i32, i32) {
    %c0_i32 = arith.constant 0 : i32
    %c0_i32_0 = arith.constant 0 : i32
    %c0_i32_1 = arith.constant 0 : i32
    return %arg0, %c0_i32, %c0_i32_0 : i32, i32, i32
  }
  func.func @transform_8(%arg0: i32) -> (i32, i32, i32) {
    %c0_i32 = arith.constant 0 : i32
    %c0_i32_0 = arith.constant 0 : i32
    %c0_i32_1 = arith.constant 0 : i32
    return %arg0, %c0_i32, %c0_i32_0 : i32, i32, i32
  }
  func.func @transform_9(%arg0: i32) -> (i32, i32) {
    %c0_i32 = arith.constant 0 : i32
    %c0_i32_0 = arith.constant 0 : i32
    %c0_i32_1 = arith.constant 0 : i32
    return %c0_i32, %c0_i32_0 : i32, i32
  }
  func.func @transform_10(%arg0: i32) -> (i32, i32) {
    %c0_i32 = arith.constant 0 : i32
    %c0_i32_0 = arith.constant 0 : i32
    %c0_i32_1 = arith.constant 0 : i32
    return %c0_i32, %c0_i32_0 : i32, i32
  }
  func.func @transform_11(%arg0: i32) -> (i32, i32, i32) {
    %c0_i32 = arith.constant 0 : i32
    %c0_i32_0 = arith.constant 0 : i32
    %c0_i32_1 = arith.constant 0 : i32
    return %arg0, %c0_i32, %c0_i32_0 : i32, i32, i32
  }
  func.func @transform_12(%arg0: i32) -> (i32, i32, i32) {
    %c0_i32 = arith.constant 0 : i32
    %c0_i32_0 = arith.constant 0 : i32
    %c0_i32_1 = arith.constant 0 : i32
    return %arg0, %c0_i32, %c0_i32_0 : i32, i32, i32
  }
  func.func @transform_13(%arg0: i32) -> (i32, i32, i32) {
    %c0_i32 = arith.constant 0 : i32
    %c0_i32_0 = arith.constant 0 : i32
    %c0_i32_1 = arith.constant 0 : i32
    return %arg0, %c0_i32, %c0_i32_0 : i32, i32, i32
  }
}

</mosaic_0001>

<llo_original>
// kernel: tpu_custom_call.1
$region0: #{tpu_custom_call.1}
  #allocation0 [shape = 'u32[]', space=smem, size = 0x4, offset = 0x4, fixed_abs, tag = 'smem constant byte address 0x4 - core index']
  #allocation1 [shape = 'u32[144,128]{1,0:T(1,128)}', space=vmem, size = 0x12000, scoped, tag = 'internal scratch']
  %s0 = inlined_call_operand.hbm [shape: f32[16,128], index: 0, kind: input, shape index: {}]
  %s1 = inlined_call_operand.hbm [shape: f32[128,128], index: 1, kind: input, shape index: {}]
  %s2 = inlined_call_operand.vmem [shape: f32[1,128], index: 2, kind: input, shape index: {}]
  %s3 = inlined_call_operand.hbm [shape: bf16[4,128,128], index: 3, kind: input, shape index: {}]
  %s4 = inlined_call_operand.vmem [shape: f32[4,1,128], index: 4, kind: input, shape index: {}]
  %s5 = inlined_call_operand.hbm [shape: f32[128,128], index: 5, kind: input, shape index: {}]
  %s6 = inlined_call_operand.vmem [shape: f32[1,128], index: 6, kind: input, shape index: {}]
  %s7 = inlined_call_operand.hbm [shape: bf16[4,128,128], index: 7, kind: input, shape index: {}]
  %s8 = inlined_call_operand.vmem [shape: f32[4,1,128], index: 8, kind: input, shape index: {}]
  %s9 = inlined_call_operand.hbm [shape: f32[128,128], index: 9, kind: input, shape index: {}]
  %s10 = inlined_call_operand.vmem [shape: f32[1,128], index: 10, kind: input, shape index: {}]
  %s11 = inlined_call_operand.hbm [shape: bf16[4,128,128], index: 11, kind: input, shape index: {}]
  %s12 = inlined_call_operand.vmem [shape: f32[4,1,128], index: 12, kind: input, shape index: {}]
  %s13 = inlined_call_operand.hbm [shape: f32[4,16,128], index: 13, kind: output, shape index: {}]
  %s14 = sld [smem:[#allocation0]]
  $region90: #{tpu_custom_call.1} parent=0
    _
  %s16 = ssub.s32 1, %s14
  %s17 = scalar_select 0, %s16, %s14
  $region1: #{tpu_custom_call.1} parent=0
    #allocation2 [shape = 'u8[8192]{0}', space=vmem, size = 0x2000, scoped, tag = 'input window, operand 0, single buffered']
    #allocation3 [shape = 's32[1]{0}', space=sflag, size = 0x4, scoped, tag = 'scoped memory for tpu_custom_call.1']
    #allocation4 [shape = 's32[1]{0}', space=sflag, size = 0x4, scoped, tag = 'scoped memory for tpu_custom_call.1']
    #allocation5 [shape = 'u8[65536]{0}', space=vmem, size = 0x10000, scoped, tag = 'input window, operand 1, single buffered']
    #allocation6 [shape = 's32[1]{0}', space=sflag, size = 0x4, scoped, tag = 'scoped memory for tpu_custom_call.1']
    #allocation7 [shape = 'u8[131072]{0}', space=vmem, size = 0x20000, scoped, tag = 'input window, operand 3, single buffered']
    #allocation8 [shape = 'u8[65536]{0}', space=vmem, size = 0x10000, scoped, tag = 'input window, operand 5, single buffered']
    #allocation9 [shape = 's32[1]{0}', space=sflag, size = 0x4, scoped, tag = 'scoped memory for tpu_custom_call.1']
    #allocation10 [shape = 'u8[131072]{0}', space=vmem, size = 0x20000, scoped, tag = 'input window, operand 7, single buffered']
    #allocation11 [shape = 'u8[65536]{0}', space=vmem, size = 0x10000, scoped, tag = 'input window, operand 9, single buffered']
    #allocation12 [shape = 's32[1]{0}', space=sflag, size = 0x4, scoped, tag = 'scoped memory for tpu_custom_call.1']
    #allocation13 [shape = 'u8[131072]{0}', space=vmem, size = 0x20000, scoped, tag = 'input window, operand 11, single buffered']
    #allocation14 [shape = 'u8[32768]{0}', space=vmem, size = 0x8000, scoped, tag = 'output window, operand 0, single buffered']
    %18 = vsyncpa [#allocation3], 0
    %19 = vsyncpa [#allocation6], 0
    %20 = vsyncpa [#allocation9], 0
    %21 = vsyncpa [#allocation12], 0
    %22 = vsyncpa [#allocation4], 0
    // Predicated region
    $region2: #{tpu_custom_call.1} parent=1 // pred_check
      _
    $region3: #{tpu_custom_call.1} parent=1 // pred_check_branch
      %24 = sbr.rel (0) target = $region5
    $region4: #{tpu_custom_call.1} parent=1 // pred_region
      %s26 = ssub.s32 256, 256
      %27 = vsyncadd [#allocation3], %s26
      %s28 = sshll.u32 [#allocation2], 4
      %s29 = int_to_ptr.vmem [resolvable:$true] %s28
      %34 = dma.hbm_to_vmem [thread:$0]  %s0, 256, %s29, [#allocation3], 128, 128, 8
    $region5: #{tpu_custom_call.1} parent=1 // pred_fallthru
      _
    // Predicated region
    $region6: #{tpu_custom_call.1} parent=1 // pred_check
      _
    $region7: #{tpu_custom_call.1} parent=1 // pred_check_branch
      %36 = sbr.rel (0) target = $region9
    $region8: #{tpu_custom_call.1} parent=1 // pred_region
      %s38 = ssub.s32 2048, 2048
      %39 = vsyncadd [#allocation6], %s38
      %s40 = sshll.u32 [#allocation5], 4
      %s41 = int_to_ptr.vmem [resolvable:$true] %s40
      %46 = dma.hbm_to_vmem [thread:$0]  %s1, 2048, %s41, [#allocation6], 128, 128, 8
    $region9: #{tpu_custom_call.1} parent=1 // pred_fallthru
      _
    // Predicated region
    $region10: #{tpu_custom_call.1} parent=1 // pred_check
      _
    $region11: #{tpu_custom_call.1} parent=1 // pred_check_branch
      %48 = sbr.rel (0) target = $region13
    $region12: #{tpu_custom_call.1} parent=1 // pred_region
      _
    $region13: #{tpu_custom_call.1} parent=1 // pred_fallthru
      _
    // Predicated region
    $region14: #{tpu_custom_call.1} parent=1 // pred_check
      _
    $region15: #{tpu_custom_call.1} parent=1 // pred_check_branch
      %50 = sbr.rel (0) target = $region17
    $region16: #{tpu_custom_call.1} parent=1 // pred_region
      %s52 = ssub.s32 4096, 4096
      %53 = vsyncadd [#allocation6], %s52
      %s54 = sshll.u32 [#allocation7], 4
      %s55 = int_to_ptr.vmem [resolvable:$true] %s54
      %60 = dma.hbm_to_vmem [thread:$0]  %s3, 4096, %s55, [#allocation6], 64, 64, 4
    $region17: #{tpu_custom_call.1} parent=1 // pred_fallthru
      _
    // Predicated region
    $region18: #{tpu_custom_call.1} parent=1 // pred_check
      _
    $region19: #{tpu_custom_call.1} parent=1 // pred_check_branch
      %62 = sbr.rel (0) target = $region21
    $region20: #{tpu_custom_call.1} parent=1 // pred_region
      _
    $region21: #{tpu_custom_call.1} parent=1 // pred_fallthru
      _
    // Predicated region
    $region22: #{tpu_custom_call.1} parent=1 // pred_check
      _
    $region23: #{tpu_custom_call.1} parent=1 // pred_check_branch
      %64 = sbr.rel (0) target = $region25
    $region24: #{tpu_custom_call.1} parent=1 // pred_region
      %s66 = ssub.s32 2048, 2048
      %67 = vsyncadd [#allocation9], %s66
      %s68 = sshll.u32 [#allocation8], 4
      %s69 = int_to_ptr.vmem [resolvable:$true] %s68
      %74 = dma.hbm_to_vmem [thread:$0]  %s5, 2048, %s69, [#allocation9], 128, 128, 8
    $region25: #{tpu_custom_call.1} parent=1 // pred_fallthru
      _
    // Predicated region
    $region26: #{tpu_custom_call.1} parent=1 // pred_check
      _
    $region27: #{tpu_custom_call.1} parent=1 // pred_check_branch
      %76 = sbr.rel (0) target = $region29
    $region28: #{tpu_custom_call.1} parent=1 // pred_region
      _
    $region29: #{tpu_custom_call.1} parent=1 // pred_fallthru
      _
    // Predicated region
    $region30: #{tpu_custom_call.1} parent=1 // pred_check
      _
    $region31: #{tpu_custom_call.1} parent=1 // pred_check_branch
      %78 = sbr.rel (0) target = $region33
    $region32: #{tpu_custom_call.1} parent=1 // pred_region
      %s80 = ssub.s32 4096, 4096
      %81 = vsyncadd [#allocation9], %s80
      %s82 = sshll.u32 [#allocation10], 4
      %s83 = int_to_ptr.vmem [resolvable:$true] %s82
      %88 = dma.hbm_to_vmem [thread:$0]  %s7, 4096, %s83, [#allocation9], 64, 64, 4
    $region33: #{tpu_custom_call.1} parent=1 // pred_fallthru
      _
    // Predicated region
    $region34: #{tpu_custom_call.1} parent=1 // pred_check
      _
    $region35: #{tpu_custom_call.1} parent=1 // pred_check_branch
      %90 = sbr.rel (0) target = $region37
    $region36: #{tpu_custom_call.1} parent=1 // pred_region
      _
    $region37: #{tpu_custom_call.1} parent=1 // pred_fallthru
      _
    // Predicated region
    $region38: #{tpu_custom_call.1} parent=1 // pred_check
      _
    $region39: #{tpu_custom_call.1} parent=1 // pred_check_branch
      %92 = sbr.rel (0) target = $region41
    $region40: #{tpu_custom_call.1} parent=1 // pred_region
      %s94 = ssub.s32 2048, 2048
      %95 = vsyncadd [#allocation12], %s94
      %s96 = sshll.u32 [#allocation11], 4
      %s97 = int_to_ptr.vmem [resolvable:$true] %s96
      %102 = dma.hbm_to_vmem [thread:$0]  %s9, 2048, %s97, [#allocation12], 128, 128, 8
    $region41: #{tpu_custom_call.1} parent=1 // pred_fallthru
      _
    // Predicated region
    $region42: #{tpu_custom_call.1} parent=1 // pred_check
      _
    $region43: #{tpu_custom_call.1} parent=1 // pred_check_branch
      %104 = sbr.rel (0) target = $region45
    $region44: #{tpu_custom_call.1} parent=1 // pred_region
      _
    $region45: #{tpu_custom_call.1} parent=1 // pred_fallthru
      _
    // Predicated region
    $region46: #{tpu_custom_call.1} parent=1 // pred_check
      _
    $region47: #{tpu_custom_call.1} parent=1 // pred_check_branch
      %106 = sbr.rel (0) target = $region49
    $region48: #{tpu_custom_call.1} parent=1 // pred_region
      %s108 = ssub.s32 4096, 4096
      %109 = vsyncadd [#allocation12], %s108
      %s110 = sshll.u32 [#allocation13], 4
      %s111 = int_to_ptr.vmem [resolvable:$true] %s110
      %116 = dma.hbm_to_vmem [thread:$0]  %s11, 4096, %s111, [#allocation12], 64, 64, 4
    $region49: #{tpu_custom_call.1} parent=1 // pred_fallthru
      _
    // Predicated region
    $region50: #{tpu_custom_call.1} parent=1 // pred_check
      _
    $region51: #{tpu_custom_call.1} parent=1 // pred_check_branch
      %118 = sbr.rel (0) target = $region53
    $region52: #{tpu_custom_call.1} parent=1 // pred_region
      _
    $region53: #{tpu_custom_call.1} parent=1 // pred_fallthru
      _
    // Predicated region
    $region54: #{tpu_custom_call.1} parent=1 // pred_check
      _
    $region55: #{tpu_custom_call.1} parent=1 // pred_check_branch
      %120 = sbr.rel (0) target = $region57
    $region56: #{tpu_custom_call.1} parent=1 // pred_region
      %121 = dma.done [#allocation3], 256
    $region57: #{tpu_custom_call.1} parent=1 // pred_fallthru
      _
    // Predicated region
    $region58: #{tpu_custom_call.1} parent=1 // pred_check
      _
    $region59: #{tpu_custom_call.1} parent=1 // pred_check_branch
      %123 = sbr.rel (0) target = $region61
    $region60: #{tpu_custom_call.1} parent=1 // pred_region
      %124 = dma.done [#allocation6], 2048
    $region61: #{tpu_custom_call.1} parent=1 // pred_fallthru
      _
    // Predicated region
    $region62: #{tpu_custom_call.1} parent=1 // pred_check
      _
    $region63: #{tpu_custom_call.1} parent=1 // pred_check_branch
      %126 = sbr.rel (0) target = $region65
    $region64: #{tpu_custom_call.1} parent=1 // pred_region
      %127 = dma.done [#allocation6], 4096
    $region65: #{tpu_custom_call.1} parent=1 // pred_fallthru
      _
    // Predicated region
    $region66: #{tpu_custom_call.1} parent=1 // pred_check
      _
    $region67: #{tpu_custom_call.1} parent=1 // pred_check_branch
      %129 = sbr.rel (0) target = $region69
    $region68: #{tpu_custom_call.1} parent=1 // pred_region
      %130 = dma.done [#allocation9], 2048
    $region69: #{tpu_custom_call.1} parent=1 // pred_fallthru
      _
    // Predicated region
    $region70: #{tpu_custom_call.1} parent=1 // pred_check
      _
    $region71: #{tpu_custom_call.1} parent=1 // pred_check_branch
      %132 = sbr.rel (0) target = $region73
    $region72: #{tpu_custom_call.1} parent=1 // pred_region
      %133 = dma.done [#allocation9], 4096
    $region73: #{tpu_custom_call.1} parent=1 // pred_fallthru
      _
    // Predicated region
    $region74: #{tpu_custom_call.1} parent=1 // pred_check
      _
    $region75: #{tpu_custom_call.1} parent=1 // pred_check_branch
      %135 = sbr.rel (0) target = $region77
    $region76: #{tpu_custom_call.1} parent=1 // pred_region
      %136 = dma.done [#allocation12], 2048
    $region77: #{tpu_custom_call.1} parent=1 // pred_fallthru
      _
    // Predicated region
    $region78: #{tpu_custom_call.1} parent=1 // pred_check
      _
    $region79: #{tpu_custom_call.1} parent=1 // pred_check_branch
      %138 = sbr.rel (0) target = $region81
    $region80: #{tpu_custom_call.1} parent=1 // pred_region
      %139 = dma.done [#allocation12], 4096
    $region81: #{tpu_custom_call.1} parent=1 // pred_fallthru
      _
    %v141 = vld [vmem:[#allocation2] sm:$0xff]
    %v142 = vld [vmem:[#allocation2 + $0x8] sm:$0xff]
    %v143 = vld [vmem:[#allocation5] sm:$0xff]
    %v144 = vld [vmem:[#allocation5 + $0x8] sm:$0xff]
    %v145 = vld [vmem:[#allocation5 + $0x10] sm:$0xff]
    %v146 = vld [vmem:[#allocation5 + $0x18] sm:$0xff]
    %v147 = vld [vmem:[#allocation5 + $0x20] sm:$0xff]
    %v148 = vld [vmem:[#allocation5 + $0x28] sm:$0xff]
    %v149 = vld [vmem:[#allocation5 + $0x30] sm:$0xff]
    %v150 = vld [vmem:[#allocation5 + $0x38] sm:$0xff]
    %v151 = vld [vmem:[#allocation5 + $0x40] sm:$0xff]
    %v152 = vld [vmem:[#allocation5 + $0x48] sm:$0xff]
    %v153 = vld [vmem:[#allocation5 + $0x50] sm:$0xff]
    %v154 = vld [vmem:[#allocation5 + $0x58] sm:$0xff]
    %v155 = vld [vmem:[#allocation5 + $0x60] sm:$0xff]
    %v156 = vld [vmem:[#allocation5 + $0x68] sm:$0xff]
    %v157 = vld [vmem:[#allocation5 + $0x70] sm:$0xff]
    %v158 = vld [vmem:[#allocation5 + $0x78] sm:$0xff]
    %159 = vmatprep.subr.mxu0 0.0
    %160 = vmatpush1.xpose.msra.mxu0 %v143
    %161 = vmatprep.subr.mxu0 0.0
    %162 = vmatpush1.xpose.msra.mxu0 %v144
    %163 = vmatprep.subr.mxu0 0.0
    %164 = vmatpush1.xpose.msra.mxu0 %v145
    %165 = vmatprep.subr.mxu0 0.0
    %166 = vmatpush1.xpose.msra.mxu0 %v146
    %167 = vmatprep.subr.mxu0 0.0
    %168 = vmatpush1.xpose.msra.mxu0 %v147
    %169 = vmatprep.subr.mxu0 0.0
    %170 = vmatpush1.xpose.msra.mxu0 %v148
    %171 = vmatprep.subr.mxu0 0.0
    %172 = vmatpush1.xpose.msra.mxu0 %v149
    %173 = vmatprep.subr.mxu0 0.0
    %174 = vmatpush1.xpose.msra.mxu0 %v150
    %175 = vmatprep.subr.mxu0 0.0
    %176 = vmatpush1.xpose.msra.mxu0 %v151
    %177 = vmatprep.subr.mxu0 0.0
    %178 = vmatpush1.xpose.msra.mxu0 %v152
    %179 = vmatprep.subr.mxu0 0.0
    %180 = vmatpush1.xpose.msra.mxu0 %v153
    %181 = vmatprep.subr.mxu0 0.0
    %182 = vmatpush1.xpose.msra.mxu0 %v154
    %183 = vmatprep.subr.mxu0 0.0
    %184 = vmatpush1.xpose.msra.mxu0 %v155
    %185 = vmatprep.subr.mxu0 0.0
    %186 = vmatpush1.xpose.msra.mxu0 %v156
    %187 = vmatprep.subr.mxu0 0.0
    %188 = vmatpush1.xpose.msra.mxu0 %v157
    %189 = vmatprep.subr.mxu0 0.0
    %190 = vmatpush1.xpose.msra.mxu0 %v158
    %191 = vmatprep.subr.mxu0 0.0
    %192 = vmatpush1.xpose.msra.mxu0 0.0
    %193 = vmatprep.subr.mxu0 0.0
    %194 = vmatpush1.xpose.msra.mxu0 0.0
    %195 = vmatprep.subr.mxu0 0.0
    %196 = vmatpush1.xpose.msra.mxu0 0.0
    %197 = vmatprep.subr.mxu0 0.0
    %198 = vmatpush1.xpose.msra.mxu0 0.0
    %199 = vmatprep.subr.mxu0 0.0
    %200 = vmatpush1.xpose.msra.mxu0 0.0
    %201 = vmatprep.subr.mxu0 0.0
    %202 = vmatpush1.xpose.msra.mxu0 0.0
    %203 = vmatprep.subr.mxu0 0.0
    %204 = vmatpush1.xpose.msra.mxu0 0.0
    %205 = vmatprep.subr.mxu0 0.0
    %206 = vmatpush1.xpose.msra.mxu0 0.0
    %207 = vmatprep.subr.mxu0 0.0
    %208 = vmatpush1.xpose.msra.mxu0 0.0
    %209 = vmatprep.subr.mxu0 0.0
    %210 = vmatpush1.xpose.msra.mxu0 0.0
    %211 = vmatprep.subr.mxu0 0.0
    %212 = vmatpush1.xpose.msra.mxu0 0.0
    %213 = vmatprep.subr.mxu0 0.0
    %214 = vmatpush1.xpose.msra.mxu0 0.0
    %215 = vmatprep.subr.mxu0 0.0
    %216 = vmatpush1.xpose.msra.mxu0 0.0
    %217 = vmatprep.subr.mxu0 0.0
    %218 = vmatpush1.xpose.msra.mxu0 0.0
    %219 = vmatprep.subr.mxu0 0.0
    %220 = vmatpush1.xpose.msra.mxu0 0.0
    %221 = vmatprep.subr.mxu0 0.0
    %222 = vmatpush1.xpose.msra.mxu0 0.0
    %223 = vmatprep.mubr.f32.mxu0 0.0
    %224 = vmatmul.mubr.f32.gmra.mrb[0].mxu0 %v141
    %v225 = vpop.f32.mrb[0].mxu0
    %v226 = vadd.f32 0.0, %v225
    %v227 = vpop.f32.mrb[0].mxu0
    %228 = vmatprep.mubr.f32.mxu0 0.0
    %229 = vmatmul.mubr.f32.gmra.mrb[0].mxu0 %v142
    %v230 = vpop.f32.mrb[0].mxu0
    %v231 = vadd.f32 0.0, %v230
    %v232 = vpop.f32.mrb[0].mxu0
    %233 = vdwg.mxu0
    %v234 = vpack.c.bf16 %v142, %v141
    %v235 = vld [vmem:[#allocation7] sm:$0xf]
    %v236 = vld [vmem:[#allocation7 + $0x4] sm:$0xf]
    %v237 = vld [vmem:[#allocation7 + $0x8] sm:$0xf]
    %v238 = vld [vmem:[#allocation7 + $0xc] sm:$0xf]
    %v239 = vld [vmem:[#allocation7 + $0x10] sm:$0xf]
    %v240 = vld [vmem:[#allocation7 + $0x14] sm:$0xf]
    %v241 = vld [vmem:[#allocation7 + $0x18] sm:$0xf]
    %v242 = vld [vmem:[#allocation7 + $0x1c] sm:$0xf]
    %v243 = vld [vmem:[#allocation7 + $0x20] sm:$0xf]
    %v244 = vld [vmem:[#allocation7 + $0x24] sm:$0xf]
    %v245 = vld [vmem:[#allocation7 + $0x28] sm:$0xf]
    %v246 = vld [vmem:[#allocation7 + $0x2c] sm:$0xf]
    %v247 = vld [vmem:[#allocation7 + $0x30] sm:$0xf]
    %v248 = vld [vmem:[#allocation7 + $0x34] sm:$0xf]
    %v249 = vld [vmem:[#allocation7 + $0x38] sm:$0xf]
    %v250 = vld [vmem:[#allocation7 + $0x3c] sm:$0xf]
    %v251 = vld [vmem:[#allocation7 + $0x40] sm:$0xf]
    %v252 = vld [vmem:[#allocation7 + $0x44] sm:$0xf]
    %v253 = vld [vmem:[#allocation7 + $0x48] sm:$0xf]
    %v254 = vld [vmem:[#allocation7 + $0x4c] sm:$0xf]
    %v255 = vld [vmem:[#allocation7 + $0x50] sm:$0xf]
    %v256 = vld [vmem:[#allocation7 + $0x54] sm:$0xf]
    %v257 = vld [vmem:[#allocation7 + $0x58] sm:$0xf]
    %v258 = vld [vmem:[#allocation7 + $0x5c] sm:$0xf]
    %v259 = vld [vmem:[#allocation7 + $0x60] sm:$0xf]
    %v260 = vld [vmem:[#allocation7 + $0x64] sm:$0xf]
    %v261 = vld [vmem:[#allocation7 + $0x68] sm:$0xf]
    %v262 = vld [vmem:[#allocation7 + $0x6c] sm:$0xf]
    %v263 = vld [vmem:[#allocation7 + $0x70] sm:$0xf]
    %v264 = vld [vmem:[#allocation7 + $0x74] sm:$0xf]
    %v265 = vld [vmem:[#allocation7 + $0x78] sm:$0xf]
    %v266 = vld [vmem:[#allocation7 + $0x7c] sm:$0xf]
    %v267 = vld [vmem:[#allocation7 + $0x80] sm:$0xf]
    %v268 = vld [vmem:[#allocation7 + $0x84] sm:$0xf]
    %v269 = vld [vmem:[#allocation7 + $0x88] sm:$0xf]
    %v270 = vld [vmem:[#allocation7 + $0x8c] sm:$0xf]
    %v271 = vld [vmem:[#allocation7 + $0x90] sm:$0xf]
    %v272 = vld [vmem:[#allocation7 + $0x94] sm:$0xf]
    %v273 = vld [vmem:[#allocation7 + $0x98] sm:$0xf]
    %v274 = vld [vmem:[#allocation7 + $0x9c] sm:$0xf]
    %v275 = vld [vmem:[#allocation7 + $0xa0] sm:$0xf]
    %v276 = vld [vmem:[#allocation7 + $0xa4] sm:$0xf]
    %v277 = vld [vmem:[#allocation7 + $0xa8] sm:$0xf]
    %v278 = vld [vmem:[#allocation7 + $0xac] sm:$0xf]
    %v279 = vld [vmem:[#allocation7 + $0xb0] sm:$0xf]
    %v280 = vld [vmem:[#allocation7 + $0xb4] sm:$0xf]
    %v281 = vld [vmem:[#allocation7 + $0xb8] sm:$0xf]
    %v282 = vld [vmem:[#allocation7 + $0xbc] sm:$0xf]
    %v283 = vld [vmem:[#allocation7 + $0xc0] sm:$0xf]
    %v284 = vld [vmem:[#allocation7 + $0xc4] sm:$0xf]
    %v285 = vld [vmem:[#allocation7 + $0xc8] sm:$0xf]
    %v286 = vld [vmem:[#allocation7 + $0xcc] sm:$0xf]
    %v287 = vld [vmem:[#allocation7 + $0xd0] sm:$0xf]
    %v288 = vld [vmem:[#allocation7 + $0xd4] sm:$0xf]
    %v289 = vld [vmem:[#allocation7 + $0xd8] sm:$0xf]
    %v290 = vld [vmem:[#allocation7 + $0xdc] sm:$0xf]
    %v291 = vld [vmem:[#allocation7 + $0xe0] sm:$0xf]
    %v292 = vld [vmem:[#allocation7 + $0xe4] sm:$0xf]
    %v293 = vld [vmem:[#allocation7 + $0xe8] sm:$0xf]
    %v294 = vld [vmem:[#allocation7 + $0xec] sm:$0xf]
    %v295 = vld [vmem:[#allocation7 + $0xf0] sm:$0xf]
    %v296 = vld [vmem:[#allocation7 + $0xf4] sm:$0xf]
    %v297 = vld [vmem:[#allocation7 + $0xf8] sm:$0xf]
    %v298 = vld [vmem:[#allocation7 + $0xfc] sm:$0xf]
    %v315 = vunpack.c.l.b16 %v235
    %v316 = vunpack.c.l.b16 %v236
    %v317 = vunpack.c.l.b16 %v237
    %v318 = vunpack.c.l.b16 %v238
    %v319 = vunpack.c.l.b16 %v239
    %v320 = vunpack.c.l.b16 %v240
    %v321 = vunpack.c.l.b16 %v241
    %v322 = vunpack.c.l.b16 %v242
    %v323 = vunpack.c.l.b16 %v243
    %v324 = vunpack.c.l.b16 %v244
    %v325 = vunpack.c.l.b16 %v245
    %v326 = vunpack.c.l.b16 %v246
    %v327 = vunpack.c.l.b16 %v247
    %v328 = vunpack.c.l.b16 %v248
    %v329 = vunpack.c.l.b16 %v249
    %v330 = vunpack.c.l.b16 %v250
    %v331 = vpack.c.b16 %v316, %v315
    %v332 = vpack.c.b16 %v318, %v317
    %v333 = vpack.c.b16 %v320, %v319
    %v334 = vpack.c.b16 %v322, %v321
    %v335 = vpack.c.b16 %v324, %v323
    %v336 = vpack.c.b16 %v326, %v325
    %v337 = vpack.c.b16 %v328, %v327
    %v338 = vpack.c.b16 %v330, %v329
    %347 = vmatprep.subr.bf16.mxu0 0
    %348 = vmatpush1.bf16.xpose.msra.mxu0 %v331
    %349 = vmatprep.subr.bf16.mxu0 0
    %350 = vmatpush1.bf16.xpose.msra.mxu0 %v332
    %351 = vmatprep.subr.bf16.mxu0 0
    %352 = vmatpush1.bf16.xpose.msra.mxu0 %v333
    %353 = vmatprep.subr.bf16.mxu0 0
    %354 = vmatpush1.bf16.xpose.msra.mxu0 %v334
    %355 = vmatprep.subr.bf16.mxu0 0
    %356 = vmatpush1.bf16.xpose.msra.mxu0 %v335
    %357 = vmatprep.subr.bf16.mxu0 0
    %358 = vmatpush1.bf16.xpose.msra.mxu0 %v336
    %359 = vmatprep.subr.bf16.mxu0 0
    %360 = vmatpush1.bf16.xpose.msra.mxu0 %v337
    %361 = vmatprep.subr.bf16.mxu0 0
    %362 = vmatpush1.bf16.xpose.msra.mxu0 %v338
    %363 = vmatprep.subr.bf16.mxu0 0
    %364 = vmatpush1.bf16.xpose.msra.mxu0 0
    %365 = vmatprep.subr.bf16.mxu0 0
    %366 = vmatpush1.bf16.xpose.msra.mxu0 0
    %367 = vmatprep.subr.bf16.mxu0 0
    %368 = vmatpush1.bf16.xpose.msra.mxu0 0
    %369 = vmatprep.subr.bf16.mxu0 0
    %370 = vmatpush1.bf16.xpose.msra.mxu0 0
    %371 = vmatprep.subr.bf16.mxu0 0
    %372 = vmatpush1.bf16.xpose.msra.mxu0 0
    %373 = vmatprep.subr.bf16.mxu0 0
    %374 = vmatpush1.bf16.xpose.msra.mxu0 0
    %375 = vmatprep.subr.bf16.mxu0 0
    %376 = vmatpush1.bf16.xpose.msra.mxu0 0
    %377 = vmatprep.subr.bf16.mxu0 0
    %378 = vmatpush1.bf16.xpose.msra.mxu0 0
    %379 = vmatprep.mubr.bf16.mxu0 0
    %380 = vmatmul.mubr.bf16.gmra.mrb[0].mxu0 %v234
    %v381 = vpop.f32.mrb[0].mxu0
    %v382 = vadd.f32 0.0, %v381
    %v383 = vpop.f32.mrb[0].mxu0
    %v384 = vpop.f32.mrb[0].mxu0
    %v385 = vadd.f32 0.0, %v384
    %v386 = vpop.f32.mrb[0].mxu0
    %387 = vdwg.mxu0
    %v404 = vunpack.c.l.b16 %v251
    %v405 = vunpack.c.l.b16 %v252
    %v406 = vunpack.c.l.b16 %v253
    %v407 = vunpack.c.l.b16 %v254
    %v408 = vunpack.c.l.b16 %v255
    %v409 = vunpack.c.l.b16 %v256
    %v410 = vunpack.c.l.b16 %v257
    %v411 = vunpack.c.l.b16 %v258
    %v412 = vunpack.c.l.b16 %v259
    %v413 = vunpack.c.l.b16 %v260
    %v414 = vunpack.c.l.b16 %v261
    %v415 = vunpack.c.l.b16 %v262
    %v416 = vunpack.c.l.b16 %v263
    %v417 = vunpack.c.l.b16 %v264
    %v418 = vunpack.c.l.b16 %v265
    %v419 = vunpack.c.l.b16 %v266
    %v420 = vpack.c.b16 %v405, %v404
    %v421 = vpack.c.b16 %v407, %v406
    %v422 = vpack.c.b16 %v409, %v408
    %v423 = vpack.c.b16 %v411, %v410
    %v424 = vpack.c.b16 %v413, %v412
    %v425 = vpack.c.b16 %v415, %v414
    %v426 = vpack.c.b16 %v417, %v416
    %v427 = vpack.c.b16 %v419, %v418
    %436 = vmatprep.subr.bf16.mxu0 0
    %437 = vmatpush1.bf16.xpose.msra.mxu0 %v420
    %438 = vmatprep.subr.bf16.mxu0 0
    %439 = vmatpush1.bf16.xpose.msra.mxu0 %v421
    %440 = vmatprep.subr.bf16.mxu0 0
    %441 = vmatpush1.bf16.xpose.msra.mxu0 %v422
    %442 = vmatprep.subr.bf16.mxu0 0
    %443 = vmatpush1.bf16.xpose.msra.mxu0 %v423
    %444 = vmatprep.subr.bf16.mxu0 0
    %445 = vmatpush1.bf16.xpose.msra.mxu0 %v424
    %446 = vmatprep.subr.bf16.mxu0 0
    %447 = vmatpush1.bf16.xpose.msra.mxu0 %v425
    %448 = vmatprep.subr.bf16.mxu0 0
    %449 = vmatpush1.bf16.xpose.msra.mxu0 %v426
    %450 = vmatprep.subr.bf16.mxu0 0
    %451 = vmatpush1.bf16.xpose.msra.mxu0 %v427
    %452 = vmatprep.subr.bf16.mxu0 0
    %453 = vmatpush1.bf16.xpose.msra.mxu0 0
    %454 = vmatprep.subr.bf16.mxu0 0
    %455 = vmatpush1.bf16.xpose.msra.mxu0 0
    %456 = vmatprep.subr.bf16.mxu0 0
    %457 = vmatpush1.bf16.xpose.msra.mxu0 0
    %458 = vmatprep.subr.bf16.mxu0 0
    %459 = vmatpush1.bf16.xpose.msra.mxu0 0
    %460 = vmatprep.subr.bf16.mxu0 0
    %461 = vmatpush1.bf16.xpose.msra.mxu0 0
    %462 = vmatprep.subr.bf16.mxu0 0
    %463 = vmatpush1.bf16.xpose.msra.mxu0 0
    %464 = vmatprep.subr.bf16.mxu0 0
    %465 = vmatpush1.bf16.xpose.msra.mxu0 0
    %466 = vmatprep.subr.bf16.mxu0 0
    %467 = vmatpush1.bf16.xpose.msra.mxu0 0
    %468 = vmatprep.mubr.bf16.mxu0 0
    %469 = vmatmul.mubr.bf16.gmra.mrb[0].mxu0 %v234
    %v470 = vpop.f32.mrb[0].mxu0
    %v471 = vadd.f32 0.0, %v470
    %v472 = vpop.f32.mrb[0].mxu0
    %v473 = vpop.f32.mrb[0].mxu0
    %v474 = vadd.f32 0.0, %v473
    %v475 = vpop.f32.mrb[0].mxu0
    %476 = vdwg.mxu0
    %v493 = vunpack.c.l.b16 %v267
    %v494 = vunpack.c.l.b16 %v268
    %v495 = vunpack.c.l.b16 %v269
    %v496 = vunpack.c.l.b16 %v270
    %v497 = vunpack.c.l.b16 %v271
    %v498 = vunpack.c.l.b16 %v272
    %v499 = vunpack.c.l.b16 %v273
    %v500 = vunpack.c.l.b16 %v274
    %v501 = vunpack.c.l.b16 %v275
    %v502 = vunpack.c.l.b16 %v276
    %v503 = vunpack.c.l.b16 %v277
    %v504 = vunpack.c.l.b16 %v278
    %v505 = vunpack.c.l.b16 %v279
    %v506 = vunpack.c.l.b16 %v280
    %v507 = vunpack.c.l.b16 %v281
    %v508 = vunpack.c.l.b16 %v282
    %v509 = vpack.c.b16 %v494, %v493
    %v510 = vpack.c.b16 %v496, %v495
    %v511 = vpack.c.b16 %v498, %v497
    %v512 = vpack.c.b16 %v500, %v499
    %v513 = vpack.c.b16 %v502, %v501
    %v514 = vpack.c.b16 %v504, %v503
    %v515 = vpack.c.b16 %v506, %v505
    %v516 = vpack.c.b16 %v508, %v507
    %525 = vmatprep.subr.bf16.mxu0 0
    %526 = vmatpush1.bf16.xpose.msra.mxu0 %v509
    %527 = vmatprep.subr.bf16.mxu0 0
    %528 = vmatpush1.bf16.xpose.msra.mxu0 %v510
    %529 = vmatprep.subr.bf16.mxu0 0
    %530 = vmatpush1.bf16.xpose.msra.mxu0 %v511
    %531 = vmatprep.subr.bf16.mxu0 0
    %532 = vmatpush1.bf16.xpose.msra.mxu0 %v512
    %533 = vmatprep.subr.bf16.mxu0 0
    %534 = vmatpush1.bf16.xpose.msra.mxu0 %v513
    %535 = vmatprep.subr.bf16.mxu0 0
    %536 = vmatpush1.bf16.xpose.msra.mxu0 %v514
    %537 = vmatprep.subr.bf16.mxu0 0
    %538 = vmatpush1.bf16.xpose.msra.mxu0 %v515
    %539 = vmatprep.subr.bf16.mxu0 0
    %540 = vmatpush1.bf16.xpose.msra.mxu0 %v516
    %541 = vmatprep.subr.bf16.mxu0 0
    %542 = vmatpush1.bf16.xpose.msra.mxu0 0
    %543 = vmatprep.subr.bf16.mxu0 0
    %544 = vmatpush1.bf16.xpose.msra.mxu0 0
    %545 = vmatprep.subr.bf16.mxu0 0
    %546 = vmatpush1.bf16.xpose.msra.mxu0 0
    %547 = vmatprep.subr.bf16.mxu0 0
    %548 = vmatpush1.bf16.xpose.msra.mxu0 0
    %549 = vmatprep.subr.bf16.mxu0 0
    %550 = vmatpush1.bf16.xpose.msra.mxu0 0
    %551 = vmatprep.subr.bf16.mxu0 0
    %552 = vmatpush1.bf16.xpose.msra.mxu0 0
    %553 = vmatprep.subr.bf16.mxu0 0
    %554 = vmatpush1.bf16.xpose.msra.mxu0 0
    %555 = vmatprep.subr.bf16.mxu0 0
    %556 = vmatpush1.bf16.xpose.msra.mxu0 0
    %557 = vmatprep.mubr.bf16.mxu0 0
    %558 = vmatmul.mubr.bf16.gmra.mrb[0].mxu0 %v234
    %v559 = vpop.f32.mrb[0].mxu0
    %v560 = vadd.f32 0.0, %v559
    %v561 = vpop.f32.mrb[0].mxu0
    %v562 = vpop.f32.mrb[0].mxu0
    %v563 = vadd.f32 0.0, %v562
    %v564 = vpop.f32.mrb[0].mxu0
    %565 = vdwg.mxu0
    %v582 = vunpack.c.l.b16 %v283
    %v583 = vunpack.c.l.b16 %v284
    %v584 = vunpack.c.l.b16 %v285
    %v585 = vunpack.c.l.b16 %v286
    %v586 = vunpack.c.l.b16 %v287
    %v587 = vunpack.c.l.b16 %v288
    %v588 = vunpack.c.l.b16 %v289
    %v589 = vunpack.c.l.b16 %v290
    %v590 = vunpack.c.l.b16 %v291
    %v591 = vunpack.c.l.b16 %v292
    %v592 = vunpack.c.l.b16 %v293
    %v593 = vunpack.c.l.b16 %v294
    %v594 = vunpack.c.l.b16 %v295
    %v595 = vunpack.c.l.b16 %v296
    %v596 = vunpack.c.l.b16 %v297
    %v597 = vunpack.c.l.b16 %v298
    %v598 = vpack.c.b16 %v583, %v582
    %v599 = vpack.c.b16 %v585, %v584
    %v600 = vpack.c.b16 %v587, %v586
    %v601 = vpack.c.b16 %v589, %v588
    %v602 = vpack.c.b16 %v591, %v590
    %v603 = vpack.c.b16 %v593, %v592
    %v604 = vpack.c.b16 %v595, %v594
    %v605 = vpack.c.b16 %v597, %v596
    %614 = vmatprep.subr.bf16.mxu0 0
    %615 = vmatpush1.bf16.xpose.msra.mxu0 %v598
    %616 = vmatprep.subr.bf16.mxu0 0
    %617 = vmatpush1.bf16.xpose.msra.mxu0 %v599
    %618 = vmatprep.subr.bf16.mxu0 0
    %619 = vmatpush1.bf16.xpose.msra.mxu0 %v600
    %620 = vmatprep.subr.bf16.mxu0 0
    %621 = vmatpush1.bf16.xpose.msra.mxu0 %v601
    %622 = vmatprep.subr.bf16.mxu0 0
    %623 = vmatpush1.bf16.xpose.msra.mxu0 %v602
    %624 = vmatprep.subr.bf16.mxu0 0
    %625 = vmatpush1.bf16.xpose.msra.mxu0 %v603
    %626 = vmatprep.subr.bf16.mxu0 0
    %627 = vmatpush1.bf16.xpose.msra.mxu0 %v604
    %628 = vmatprep.subr.bf16.mxu0 0
    %629 = vmatpush1.bf16.xpose.msra.mxu0 %v605
    %630 = vmatprep.subr.bf16.mxu0 0
    %631 = vmatpush1.bf16.xpose.msra.mxu0 0
    %632 = vmatprep.subr.bf16.mxu0 0
    %633 = vmatpush1.bf16.xpose.msra.mxu0 0
    %634 = vmatprep.subr.bf16.mxu0 0
    %635 = vmatpush1.bf16.xpose.msra.mxu0 0
    %636 = vmatprep.subr.bf16.mxu0 0
    %637 = vmatpush1.bf16.xpose.msra.mxu0 0
    %638 = vmatprep.subr.bf16.mxu0 0
    %639 = vmatpush1.bf16.xpose.msra.mxu0 0
    %640 = vmatprep.subr.bf16.mxu0 0
    %641 = vmatpush1.bf16.xpose.msra.mxu0 0
    %642 = vmatprep.subr.bf16.mxu0 0
    %643 = vmatpush1.bf16.xpose.msra.mxu0 0
    %644 = vmatprep.subr.bf16.mxu0 0
    %645 = vmatpush1.bf16.xpose.msra.mxu0 0
    %646 = vmatprep.mubr.bf16.mxu0 0
    %647 = vmatmul.mubr.bf16.gmra.mrb[0].mxu0 %v234
    %v648 = vpop.f32.mrb[0].mxu0
    %v649 = vadd.f32 0.0, %v648
    %v650 = vpop.f32.mrb[0].mxu0
    %v651 = vpop.f32.mrb[0].mxu0
    %v652 = vadd.f32 0.0, %v651
    %v653 = vpop.f32.mrb[0].mxu0
    %654 = vdwg.mxu0
    %v655 = vld [vmem:[%s2] sm:$0x1]
    %v656 = vld [vmem:[%s4] sm:$0x1]
    %v657 = vld [vmem:[%s4 + $0x1] sm:$0x1]
    %v658 = vld [vmem:[%s4 + $0x2] sm:$0x1]
    %v659 = vld [vmem:[%s4 + $0x3] sm:$0x1]
    %v660 = vadd.f32 %v655, %v656
    %v661 = vadd.f32 %v655, %v657
    %v662 = vadd.f32 %v655, %v658
    %v663 = vadd.f32 %v655, %v659
    %v664 = vadd.f32 %v226, %v382
    %v665 = vadd.f32 %v231, %v385
    %v666 = vadd.f32 %v226, %v471
    %v667 = vadd.f32 %v231, %v474
    %v668 = vadd.f32 %v226, %v560
    %v669 = vadd.f32 %v231, %v563
    %v670 = vadd.f32 %v226, %v649
    %v671 = vadd.f32 %v231, %v652
    %v676 = vlaneseq
    %v677 = vshrl.u32 %v676, 7
    %v678 = vsub.s32 0, %v677
    %v679 = vrot.slane %v660, %v678
    %v680 = vlaneseq
    %v681 = vshrl.u32 %v680, 7
    %v682 = vsub.s32 0, %v681
    %v683 = vrot.slane %v661, %v682
    %v684 = vlaneseq
    %v685 = vshrl.u32 %v684, 7
    %v686 = vsub.s32 0, %v685
    %v687 = vrot.slane %v662, %v686
    %v688 = vlaneseq
    %v689 = vshrl.u32 %v688, 7
    %v690 = vsub.s32 0, %v689
    %v691 = vrot.slane %v663, %v690
    %v696 = vadd.f32 %v664, %v679
    %v697 = vadd.f32 %v665, %v679
    %v698 = vadd.f32 %v666, %v683
    %v699 = vadd.f32 %v667, %v683
    %v700 = vadd.f32 %v668, %v687
    %v701 = vadd.f32 %v669, %v687
    %v702 = vadd.f32 %v670, %v691
    %v703 = vadd.f32 %v671, %v691
    %v704 = vmax.f32 %v696, 0.0
    %v705 = vmax.f32 %v697, 0.0
    %v706 = vmax.f32 %v698, 0.0
    %v707 = vmax.f32 %v699, 0.0
    %v708 = vmax.f32 %v700, 0.0
    %v709 = vmax.f32 %v701, 0.0
    %v710 = vmax.f32 %v702, 0.0
    %v711 = vmax.f32 %v703, 0.0
    %v712 = vld [vmem:[#allocation8] sm:$0xff]
    %v713 = vld [vmem:[#allocation8 + $0x8] sm:$0xff]
    %v714 = vld [vmem:[#allocation8 + $0x10] sm:$0xff]
    %v715 = vld [vmem:[#allocation8 + $0x18] sm:$0xff]
    %v716 = vld [vmem:[#allocation8 + $0x20] sm:$0xff]
    %v717 = vld [vmem:[#allocation8 + $0x28] sm:$0xff]
    %v718 = vld [vmem:[#allocation8 + $0x30] sm:$0xff]
    %v719 = vld [vmem:[#allocation8 + $0x38] sm:$0xff]
    %v720 = vld [vmem:[#allocation8 + $0x40] sm:$0xff]
    %v721 = vld [vmem:[#allocation8 + $0x48] sm:$0xff]
    %v722 = vld [vmem:[#allocation8 + $0x50] sm:$0xff]
    %v723 = vld [vmem:[#allocation8 + $0x58] sm:$0xff]
    %v724 = vld [vmem:[#allocation8 + $0x60] sm:$0xff]
    %v725 = vld [vmem:[#allocation8 + $0x68] sm:$0xff]
    %v726 = vld [vmem:[#allocation8 + $0x70] sm:$0xff]
    %v727 = vld [vmem:[#allocation8 + $0x78] sm:$0xff]
    %728 = vmatprep.subr.mxu0 0.0
    %729 = vmatpush1.xpose.msra.mxu0 %v712
    %730 = vmatprep.subr.mxu0 0.0
    %731 = vmatpush1.xpose.msra.mxu0 %v713
    %732 = vmatprep.subr.mxu0 0.0
    %733 = vmatpush1.xpose.msra.mxu0 %v714
    %734 = vmatprep.subr.mxu0 0.0
    %735 = vmatpush1.xpose.msra.mxu0 %v715
    %736 = vmatprep.subr.mxu0 0.0
    %737 = vmatpush1.xpose.msra.mxu0 %v716
    %738 = vmatprep.subr.mxu0 0.0
    %739 = vmatpush1.xpose.msra.mxu0 %v717
    %740 = vmatprep.subr.mxu0 0.0
    %741 = vmatpush1.xpose.msra.mxu0 %v718
    %742 = vmatprep.subr.mxu0 0.0
    %743 = vmatpush1.xpose.msra.mxu0 %v719
    %744 = vmatprep.subr.mxu0 0.0
    %745 = vmatpush1.xpose.msra.mxu0 %v720
    %746 = vmatprep.subr.mxu0 0.0
    %747 = vmatpush1.xpose.msra.mxu0 %v721
    %748 = vmatprep.subr.mxu0 0.0
    %749 = vmatpush1.xpose.msra.mxu0 %v722
    %750 = vmatprep.subr.mxu0 0.0
    %751 = vmatpush1.xpose.msra.mxu0 %v723
    %752 = vmatprep.subr.mxu0 0.0
    %753 = vmatpush1.xpose.msra.mxu0 %v724
    %754 = vmatprep.subr.mxu0 0.0
    %755 = vmatpush1.xpose.msra.mxu0 %v725
    %756 = vmatprep.subr.mxu0 0.0
    %757 = vmatpush1.xpose.msra.mxu0 %v726
    %758 = vmatprep.subr.mxu0 0.0
    %759 = vmatpush1.xpose.msra.mxu0 %v727
    %760 = vmatprep.subr.mxu0 0.0
    %761 = vmatpush1.xpose.msra.mxu0 0.0
    %762 = vmatprep.subr.mxu0 0.0
    %763 = vmatpush1.xpose.msra.mxu0 0.0
    %764 = vmatprep.subr.mxu0 0.0
    %765 = vmatpush1.xpose.msra.mxu0 0.0
    %766 = vmatprep.subr.mxu0 0.0
    %767 = vmatpush1.xpose.msra.mxu0 0.0
    %768 = vmatprep.subr.mxu0 0.0
    %769 = vmatpush1.xpose.msra.mxu0 0.0
    %770 = vmatprep.subr.mxu0 0.0
    %771 = vmatpush1.xpose.msra.mxu0 0.0
    %772 = vmatprep.subr.mxu0 0.0
    %773 = vmatpush1.xpose.msra.mxu0 0.0
    %774 = vmatprep.subr.mxu0 0.0
    %775 = vmatpush1.xpose.msra.mxu0 0.0
    %776 = vmatprep.subr.mxu0 0.0
    %777 = vmatpush1.xpose.msra.mxu0 0.0
    %778 = vmatprep.subr.mxu0 0.0
    %779 = vmatpush1.xpose.msra.mxu0 0.0
    %780 = vmatprep.subr.mxu0 0.0
    %781 = vmatpush1.xpose.msra.mxu0 0.0
    %782 = vmatprep.subr.mxu0 0.0
    %783 = vmatpush1.xpose.msra.mxu0 0.0
    %784 = vmatprep.subr.mxu0 0.0
    %785 = vmatpush1.xpose.msra.mxu0 0.0
    %786 = vmatprep.subr.mxu0 0.0
    %787 = vmatpush1.xpose.msra.mxu0 0.0
    %788 = vmatprep.subr.mxu0 0.0
    %789 = vmatpush1.xpose.msra.mxu0 0.0
    %790 = vmatprep.subr.mxu0 0.0
    %791 = vmatpush1.xpose.msra.mxu0 0.0
    %792 = vmatprep.mubr.f32.mxu0 0.0
    %793 = vmatmul.mubr.f32.gmra.mrb[0].mxu0 %v704
    %v794 = vpop.f32.mrb[0].mxu0
    %v795 = vadd.f32 0.0, %v794
    %v796 = vpop.f32.mrb[0].mxu0
    %797 = vmatprep.mubr.f32.mxu0 0.0
    %798 = vmatmul.mubr.f32.gmra.mrb[0].mxu0 %v705
    %v799 = vpop.f32.mrb[0].mxu0
    %v800 = vadd.f32 0.0, %v799
    %v801 = vpop.f32.mrb[0].mxu0
    %802 = vmatprep.mubr.f32.mxu0 0.0
    %803 = vmatmul.mubr.f32.gmra.mrb[0].mxu0 %v706
    %v804 = vpop.f32.mrb[0].mxu0
    %v805 = vadd.f32 0.0, %v804
    %v806 = vpop.f32.mrb[0].mxu0
    %807 = vmatprep.mubr.f32.mxu0 0.0
    %808 = vmatmul.mubr.f32.gmra.mrb[0].mxu0 %v707
    %v809 = vpop.f32.mrb[0].mxu0
    %v810 = vadd.f32 0.0, %v809
    %v811 = vpop.f32.mrb[0].mxu0
    %812 = vmatprep.mubr.f32.mxu0 0.0
    %813 = vmatmul.mubr.f32.gmra.mrb[0].mxu0 %v708
    %v814 = vpop.f32.mrb[0].mxu0
    %v815 = vadd.f32 0.0, %v814
    %v816 = vpop.f32.mrb[0].mxu0
    %817 = vmatprep.mubr.f32.mxu0 0.0
    %818 = vmatmul.mubr.f32.gmra.mrb[0].mxu0 %v709
    %v819 = vpop.f32.mrb[0].mxu0
    %v820 = vadd.f32 0.0, %v819
    %v821 = vpop.f32.mrb[0].mxu0
    %822 = vmatprep.mubr.f32.mxu0 0.0
    %823 = vmatmul.mubr.f32.gmra.mrb[0].mxu0 %v710
    %v824 = vpop.f32.mrb[0].mxu0
    %v825 = vadd.f32 0.0, %v824
    %v826 = vpop.f32.mrb[0].mxu0
    %827 = vmatprep.mubr.f32.mxu0 0.0
    %828 = vmatmul.mubr.f32.gmra.mrb[0].mxu0 %v711
    %v829 = vpop.f32.mrb[0].mxu0
    %v830 = vadd.f32 0.0, %v829
    %v831 = vpop.f32.mrb[0].mxu0
    %832 = vdwg.mxu0
    %v833 = vpack.c.bf16 %v705, %v704
    %v834 = vpack.c.bf16 %v707, %v706
    %v835 = vpack.c.bf16 %v709, %v708
    %v836 = vpack.c.bf16 %v711, %v710
    %v837 = vld [vmem:[#allocation10] sm:$0xf]
    %v838 = vld [vmem:[#allocation10 + $0x4] sm:$0xf]
    %v839 = vld [vmem:[#allocation10 + $0x8] sm:$0xf]
    %v840 = vld [vmem:[#allocation10 + $0xc] sm:$0xf]
    %v841 = vld [vmem:[#allocation10 + $0x10] sm:$0xf]
    %v842 = vld [vmem:[#allocation10 + $0x14] sm:$0xf]
    %v843 = vld [vmem:[#allocation10 + $0x18] sm:$0xf]
    %v844 = vld [vmem:[#allocation10 + $0x1c] sm:$0xf]
    %v845 = vld [vmem:[#allocation10 + $0x20] sm:$0xf]
    %v846 = vld [vmem:[#allocation10 + $0x24] sm:$0xf]
    %v847 = vld [vmem:[#allocation10 + $0x28] sm:$0xf]
    %v848 = vld [vmem:[#allocation10 + $0x2c] sm:$0xf]
    %v849 = vld [vmem:[#allocation10 + $0x30] sm:$0xf]
    %v850 = vld [vmem:[#allocation10 + $0x34] sm:$0xf]
    %v851 = vld [vmem:[#allocation10 + $0x38] sm:$0xf]
    %v852 = vld [vmem:[#allocation10 + $0x3c] sm:$0xf]
    %v853 = vld [vmem:[#allocation10 + $0x40] sm:$0xf]
    %v854 = vld [vmem:[#allocation10 + $0x44] sm:$0xf]
    %v855 = vld [vmem:[#allocation10 + $0x48] sm:$0xf]
    %v856 = vld [vmem:[#allocation10 + $0x4c] sm:$0xf]
    %v857 = vld [vmem:[#allocation10 + $0x50] sm:$0xf]
    %v858 = vld [vmem:[#allocation10 + $0x54] sm:$0xf]
    %v859 = vld [vmem:[#allocation10 + $0x58] sm:$0xf]
    %v860 = vld [vmem:[#allocation10 + $0x5c] sm:$0xf]
    %v861 = vld [vmem:[#allocation10 + $0x60] sm:$0xf]
    %v862 = vld [vmem:[#allocation10 + $0x64] sm:$0xf]
    %v863 = vld [vmem:[#allocation10 + $0x68] sm:$0xf]
    %v864 = vld [vmem:[#allocation10 + $0x6c] sm:$0xf]
    %v865 = vld [vmem:[#allocation10 + $0x70] sm:$0xf]
    %v866 = vld [vmem:[#allocation10 + $0x74] sm:$0xf]
    %v867 = vld [vmem:[#allocation10 + $0x78] sm:$0xf]
    %v868 = vld [vmem:[#allocation10 + $0x7c] sm:$0xf]
    %v869 = vld [vmem:[#allocation10 + $0x80] sm:$0xf]
    %v870 = vld [vmem:[#allocation10 + $0x84] sm:$0xf]
    %v871 = vld [vmem:[#allocation10 + $0x88] sm:$0xf]
    %v872 = vld [vmem:[#allocation10 + $0x8c] sm:$0xf]
    %v873 = vld [vmem:[#allocation10 + $0x90] sm:$0xf]
    %v874 = vld [vmem:[#allocation10 + $0x94] sm:$0xf]
    %v875 = vld [vmem:[#allocation10 + $0x98] sm:$0xf]
    %v876 = vld [vmem:[#allocation10 + $0x9c] sm:$0xf]
    %v877 = vld [vmem:[#allocation10 + $0xa0] sm:$0xf]
    %v878 = vld [vmem:[#allocation10 + $0xa4] sm:$0xf]
    %v879 = vld [vmem:[#allocation10 + $0xa8] sm:$0xf]
    %v880 = vld [vmem:[#allocation10 + $0xac] sm:$0xf]
    %v881 = vld [vmem:[#allocation10 + $0xb0] sm:$0xf]
    %v882 = vld [vmem:[#allocation10 + $0xb4] sm:$0xf]
    %v883 = vld [vmem:[#allocation10 + $0xb8] sm:$0xf]
    %v884 = vld [vmem:[#allocation10 + $0xbc] sm:$0xf]
    %v885 = vld [vmem:[#allocation10 + $0xc0] sm:$0xf]
    %v886 = vld [vmem:[#allocation10 + $0xc4] sm:$0xf]
    %v887 = vld [vmem:[#allocation10 + $0xc8] sm:$0xf]
    %v888 = vld [vmem:[#allocation10 + $0xcc] sm:$0xf]
    %v889 = vld [vmem:[#allocation10 + $0xd0] sm:$0xf]
    %v890 = vld [vmem:[#allocation10 + $0xd4] sm:$0xf]
    %v891 = vld [vmem:[#allocation10 + $0xd8] sm:$0xf]
    %v892 = vld [vmem:[#allocation10 + $0xdc] sm:$0xf]
    %v893 = vld [vmem:[#allocation10 + $0xe0] sm:$0xf]
    %v894 = vld [vmem:[#allocation10 + $0xe4] sm:$0xf]
    %v895 = vld [vmem:[#allocation10 + $0xe8] sm:$0xf]
    %v896 = vld [vmem:[#allocation10 + $0xec] sm:$0xf]
    %v897 = vld [vmem:[#allocation10 + $0xf0] sm:$0xf]
    %v898 = vld [vmem:[#allocation10 + $0xf4] sm:$0xf]
    %v899 = vld [vmem:[#allocation10 + $0xf8] sm:$0xf]
    %v900 = vld [vmem:[#allocation10 + $0xfc] sm:$0xf]
    %v917 = vunpack.c.l.b16 %v837
    %v918 = vunpack.c.l.b16 %v838
    %v919 = vunpack.c.l.b16 %v839
    %v920 = vunpack.c.l.b16 %v840
    %v921 = vunpack.c.l.b16 %v841
    %v922 = vunpack.c.l.b16 %v842
    %v923 = vunpack.c.l.b16 %v843
    %v924 = vunpack.c.l.b16 %v844
    %v925 = vunpack.c.l.b16 %v845
    %v926 = vunpack.c.l.b16 %v846
    %v927 = vunpack.c.l.b16 %v847
    %v928 = vunpack.c.l.b16 %v848
    %v929 = vunpack.c.l.b16 %v849
    %v930 = vunpack.c.l.b16 %v850
    %v931 = vunpack.c.l.b16 %v851
    %v932 = vunpack.c.l.b16 %v852
    %v933 = vpack.c.b16 %v918, %v917
    %v934 = vpack.c.b16 %v920, %v919
    %v935 = vpack.c.b16 %v922, %v921
    %v936 = vpack.c.b16 %v924, %v923
    %v937 = vpack.c.b16 %v926, %v925
    %v938 = vpack.c.b16 %v928, %v927
    %v939 = vpack.c.b16 %v930, %v929
    %v940 = vpack.c.b16 %v932, %v931
    %949 = vmatprep.subr.bf16.mxu0 0
    %950 = vmatpush1.bf16.xpose.msra.mxu0 %v933
    %951 = vmatprep.subr.bf16.mxu0 0
    %952 = vmatpush1.bf16.xpose.msra.mxu0 %v934
    %953 = vmatprep.subr.bf16.mxu0 0
    %954 = vmatpush1.bf16.xpose.msra.mxu0 %v935
    %955 = vmatprep.subr.bf16.mxu0 0
    %956 = vmatpush1.bf16.xpose.msra.mxu0 %v936
    %957 = vmatprep.subr.bf16.mxu0 0
    %958 = vmatpush1.bf16.xpose.msra.mxu0 %v937
    %959 = vmatprep.subr.bf16.mxu0 0
    %960 = vmatpush1.bf16.xpose.msra.mxu0 %v938
    %961 = vmatprep.subr.bf16.mxu0 0
    %962 = vmatpush1.bf16.xpose.msra.mxu0 %v939
    %963 = vmatprep.subr.bf16.mxu0 0
    %964 = vmatpush1.bf16.xpose.msra.mxu0 %v940
    %965 = vmatprep.subr.bf16.mxu0 0
    %966 = vmatpush1.bf16.xpose.msra.mxu0 0
    %967 = vmatprep.subr.bf16.mxu0 0
    %968 = vmatpush1.bf16.xpose.msra.mxu0 0
    %969 = vmatprep.subr.bf16.mxu0 0
    %970 = vmatpush1.bf16.xpose.msra.mxu0 0
    %971 = vmatprep.subr.bf16.mxu0 0
    %972 = vmatpush1.bf16.xpose.msra.mxu0 0
    %973 = vmatprep.subr.bf16.mxu0 0
    %974 = vmatpush1.bf16.xpose.msra.mxu0 0
    %975 = vmatprep.subr.bf16.mxu0 0
    %976 = vmatpush1.bf16.xpose.msra.mxu0 0
    %977 = vmatprep.subr.bf16.mxu0 0
    %978 = vmatpush1.bf16.xpose.msra.mxu0 0
    %979 = vmatprep.subr.bf16.mxu0 0
    %980 = vmatpush1.bf16.xpose.msra.mxu0 0
    %981 = vmatprep.mubr.bf16.mxu0 0
    %982 = vmatmul.mubr.bf16.gmra.mrb[0].mxu0 %v833
    %v983 = vpop.f32.mrb[0].mxu0
    %v984 = vadd.f32 0.0, %v983
    %v985 = vpop.f32.mrb[0].mxu0
    %v986 = vpop.f32.mrb[0].mxu0
    %v987 = vadd.f32 0.0, %v986
    %v988 = vpop.f32.mrb[0].mxu0
    %989 = vdwg.mxu0
    %v1006 = vunpack.c.l.b16 %v853
    %v1007 = vunpack.c.l.b16 %v854
    %v1008 = vunpack.c.l.b16 %v855
    %v1009 = vunpack.c.l.b16 %v856
    %v1010 = vunpack.c.l.b16 %v857
    %v1011 = vunpack.c.l.b16 %v858
    %v1012 = vunpack.c.l.b16 %v859
    %v1013 = vunpack.c.l.b16 %v860
    %v1014 = vunpack.c.l.b16 %v861
    %v1015 = vunpack.c.l.b16 %v862
    %v1016 = vunpack.c.l.b16 %v863
    %v1017 = vunpack.c.l.b16 %v864
    %v1018 = vunpack.c.l.b16 %v865
    %v1019 = vunpack.c.l.b16 %v866
    %v1020 = vunpack.c.l.b16 %v867
    %v1021 = vunpack.c.l.b16 %v868
    %v1022 = vpack.c.b16 %v1007, %v1006
    %v1023 = vpack.c.b16 %v1009, %v1008
    %v1024 = vpack.c.b16 %v1011, %v1010
    %v1025 = vpack.c.b16 %v1013, %v1012
    %v1026 = vpack.c.b16 %v1015, %v1014
    %v1027 = vpack.c.b16 %v1017, %v1016
    %v1028 = vpack.c.b16 %v1019, %v1018
    %v1029 = vpack.c.b16 %v1021, %v1020
    %1038 = vmatprep.subr.bf16.mxu0 0
    %1039 = vmatpush1.bf16.xpose.msra.mxu0 %v1022
    %1040 = vmatprep.subr.bf16.mxu0 0
    %1041 = vmatpush1.bf16.xpose.msra.mxu0 %v1023
    %1042 = vmatprep.subr.bf16.mxu0 0
    %1043 = vmatpush1.bf16.xpose.msra.mxu0 %v1024
    %1044 = vmatprep.subr.bf16.mxu0 0
    %1045 = vmatpush1.bf16.xpose.msra.mxu0 %v1025
    %1046 = vmatprep.subr.bf16.mxu0 0
    %1047 = vmatpush1.bf16.xpose.msra.mxu0 %v1026
    %1048 = vmatprep.subr.bf16.mxu0 0
    %1049 = vmatpush1.bf16.xpose.msra.mxu0 %v1027
    %1050 = vmatprep.subr.bf16.mxu0 0
    %1051 = vmatpush1.bf16.xpose.msra.mxu0 %v1028
    %1052 = vmatprep.subr.bf16.mxu0 0
    %1053 = vmatpush1.bf16.xpose.msra.mxu0 %v1029
    %1054 = vmatprep.subr.bf16.mxu0 0
    %1055 = vmatpush1.bf16.xpose.msra.mxu0 0
    %1056 = vmatprep.subr.bf16.mxu0 0
    %1057 = vmatpush1.bf16.xpose.msra.mxu0 0
    %1058 = vmatprep.subr.bf16.mxu0 0
    %1059 = vmatpush1.bf16.xpose.msra.mxu0 0
    %1060 = vmatprep.subr.bf16.mxu0 0
    %1061 = vmatpush1.bf16.xpose.msra.mxu0 0
    %1062 = vmatprep.subr.bf16.mxu0 0
    %1063 = vmatpush1.bf16.xpose.msra.mxu0 0
    %1064 = vmatprep.subr.bf16.mxu0 0
    %1065 = vmatpush1.bf16.xpose.msra.mxu0 0
    %1066 = vmatprep.subr.bf16.mxu0 0
    %1067 = vmatpush1.bf16.xpose.msra.mxu0 0
    %1068 = vmatprep.subr.bf16.mxu0 0
    %1069 = vmatpush1.bf16.xpose.msra.mxu0 0
    %1070 = vmatprep.mubr.bf16.mxu0 0
    %1071 = vmatmul.mubr.bf16.gmra.mrb[0].mxu0 %v834
    %v1072 = vpop.f32.mrb[0].mxu0
    %v1073 = vadd.f32 0.0, %v1072
    %v1074 = vpop.f32.mrb[0].mxu0
    %v1075 = vpop.f32.mrb[0].mxu0
    %v1076 = vadd.f32 0.0, %v1075
    %v1077 = vpop.f32.mrb[0].mxu0
    %1078 = vdwg.mxu0
    %v1095 = vunpack.c.l.b16 %v869
    %v1096 = vunpack.c.l.b16 %v870
    %v1097 = vunpack.c.l.b16 %v871
    %v1098 = vunpack.c.l.b16 %v872
    %v1099 = vunpack.c.l.b16 %v873
    %v1100 = vunpack.c.l.b16 %v874
    %v1101 = vunpack.c.l.b16 %v875
    %v1102 = vunpack.c.l.b16 %v876
    %v1103 = vunpack.c.l.b16 %v877
    %v1104 = vunpack.c.l.b16 %v878
    %v1105 = vunpack.c.l.b16 %v879
    %v1106 = vunpack.c.l.b16 %v880
    %v1107 = vunpack.c.l.b16 %v881
    %v1108 = vunpack.c.l.b16 %v882
    %v1109 = vunpack.c.l.b16 %v883
    %v1110 = vunpack.c.l.b16 %v884
    %v1111 = vpack.c.b16 %v1096, %v1095
    %v1112 = vpack.c.b16 %v1098, %v1097
    %v1113 = vpack.c.b16 %v1100, %v1099
    %v1114 = vpack.c.b16 %v1102, %v1101
    %v1115 = vpack.c.b16 %v1104, %v1103
    %v1116 = vpack.c.b16 %v1106, %v1105
    %v1117 = vpack.c.b16 %v1108, %v1107
    %v1118 = vpack.c.b16 %v1110, %v1109
    %1127 = vmatprep.subr.bf16.mxu0 0
    %1128 = vmatpush1.bf16.xpose.msra.mxu0 %v1111
    %1129 = vmatprep.subr.bf16.mxu0 0
    %1130 = vmatpush1.bf16.xpose.msra.mxu0 %v1112
    %1131 = vmatprep.subr.bf16.mxu0 0
    %1132 = vmatpush1.bf16.xpose.msra.mxu0 %v1113
    %1133 = vmatprep.subr.bf16.mxu0 0
    %1134 = vmatpush1.bf16.xpose.msra.mxu0 %v1114
    %1135 = vmatprep.subr.bf16.mxu0 0
    %1136 = vmatpush1.bf16.xpose.msra.mxu0 %v1115
    %1137 = vmatprep.subr.bf16.mxu0 0
    %1138 = vmatpush1.bf16.xpose.msra.mxu0 %v1116
    %1139 = vmatprep.subr.bf16.mxu0 0
    %1140 = vmatpush1.bf16.xpose.msra.mxu0 %v1117
    %1141 = vmatprep.subr.bf16.mxu0 0
    %1142 = vmatpush1.bf16.xpose.msra.mxu0 %v1118
    %1143 = vmatprep.subr.bf16.mxu0 0
    %1144 = vmatpush1.bf16.xpose.msra.mxu0 0
    %1145 = vmatprep.subr.bf16.mxu0 0
    %1146 = vmatpush1.bf16.xpose.msra.mxu0 0
    %1147 = vmatprep.subr.bf16.mxu0 0
    %1148 = vmatpush1.bf16.xpose.msra.mxu0 0
    %1149 = vmatprep.subr.bf16.mxu0 0
    %1150 = vmatpush1.bf16.xpose.msra.mxu0 0
    %1151 = vmatprep.subr.bf16.mxu0 0
    %1152 = vmatpush1.bf16.xpose.msra.mxu0 0
    %1153 = vmatprep.subr.bf16.mxu0 0
    %1154 = vmatpush1.bf16.xpose.msra.mxu0 0
    %1155 = vmatprep.subr.bf16.mxu0 0
    %1156 = vmatpush1.bf16.xpose.msra.mxu0 0
    %1157 = vmatprep.subr.bf16.mxu0 0
    %1158 = vmatpush1.bf16.xpose.msra.mxu0 0
    %1159 = vmatprep.mubr.bf16.mxu0 0
    %1160 = vmatmul.mubr.bf16.gmra.mrb[0].mxu0 %v835
    %v1161 = vpop.f32.mrb[0].mxu0
    %v1162 = vadd.f32 0.0, %v1161
    %v1163 = vpop.f32.mrb[0].mxu0
    %v1164 = vpop.f32.mrb[0].mxu0
    %v1165 = vadd.f32 0.0, %v1164
    %v1166 = vpop.f32.mrb[0].mxu0
    %1167 = vdwg.mxu0
    %v1184 = vunpack.c.l.b16 %v885
    %v1185 = vunpack.c.l.b16 %v886
    %v1186 = vunpack.c.l.b16 %v887
    %v1187 = vunpack.c.l.b16 %v888
    %v1188 = vunpack.c.l.b16 %v889
    %v1189 = vunpack.c.l.b16 %v890
    %v1190 = vunpack.c.l.b16 %v891
    %v1191 = vunpack.c.l.b16 %v892
    %v1192 = vunpack.c.l.b16 %v893
    %v1193 = vunpack.c.l.b16 %v894
    %v1194 = vunpack.c.l.b16 %v895
    %v1195 = vunpack.c.l.b16 %v896
    %v1196 = vunpack.c.l.b16 %v897
    %v1197 = vunpack.c.l.b16 %v898
    %v1198 = vunpack.c.l.b16 %v899
    %v1199 = vunpack.c.l.b16 %v900
    %v1200 = vpack.c.b16 %v1185, %v1184
    %v1201 = vpack.c.b16 %v1187, %v1186
    %v1202 = vpack.c.b16 %v1189, %v1188
    %v1203 = vpack.c.b16 %v1191, %v1190
    %v1204 = vpack.c.b16 %v1193, %v1192
    %v1205 = vpack.c.b16 %v1195, %v1194
    %v1206 = vpack.c.b16 %v1197, %v1196
    %v1207 = vpack.c.b16 %v1199, %v1198
    %1216 = vmatprep.subr.bf16.mxu0 0
    %1217 = vmatpush1.bf16.xpose.msra.mxu0 %v1200
    %1218 = vmatprep.subr.bf16.mxu0 0
    %1219 = vmatpush1.bf16.xpose.msra.mxu0 %v1201
    %1220 = vmatprep.subr.bf16.mxu0 0
    %1221 = vmatpush1.bf16.xpose.msra.mxu0 %v1202
    %1222 = vmatprep.subr.bf16.mxu0 0
    %1223 = vmatpush1.bf16.xpose.msra.mxu0 %v1203
    %1224 = vmatprep.subr.bf16.mxu0 0
    %1225 = vmatpush1.bf16.xpose.msra.mxu0 %v1204
    %1226 = vmatprep.subr.bf16.mxu0 0
    %1227 = vmatpush1.bf16.xpose.msra.mxu0 %v1205
    %1228 = vmatprep.subr.bf16.mxu0 0
    %1229 = vmatpush1.bf16.xpose.msra.mxu0 %v1206
    %1230 = vmatprep.subr.bf16.mxu0 0
    %1231 = vmatpush1.bf16.xpose.msra.mxu0 %v1207
    %1232 = vmatprep.subr.bf16.mxu0 0
    %1233 = vmatpush1.bf16.xpose.msra.mxu0 0
    %1234 = vmatprep.subr.bf16.mxu0 0
    %1235 = vmatpush1.bf16.xpose.msra.mxu0 0
    %1236 = vmatprep.subr.bf16.mxu0 0
    %1237 = vmatpush1.bf16.xpose.msra.mxu0 0
    %1238 = vmatprep.subr.bf16.mxu0 0
    %1239 = vmatpush1.bf16.xpose.msra.mxu0 0
    %1240 = vmatprep.subr.bf16.mxu0 0
    %1241 = vmatpush1.bf16.xpose.msra.mxu0 0
    %1242 = vmatprep.subr.bf16.mxu0 0
    %1243 = vmatpush1.bf16.xpose.msra.mxu0 0
    %1244 = vmatprep.subr.bf16.mxu0 0
    %1245 = vmatpush1.bf16.xpose.msra.mxu0 0
    %1246 = vmatprep.subr.bf16.mxu0 0
    %1247 = vmatpush1.bf16.xpose.msra.mxu0 0
    %1248 = vmatprep.mubr.bf16.mxu0 0
    %1249 = vmatmul.mubr.bf16.gmra.mrb[0].mxu0 %v836
    %v1250 = vpop.f32.mrb[0].mxu0
    %v1251 = vadd.f32 0.0, %v1250
    %v1252 = vpop.f32.mrb[0].mxu0
    %v1253 = vpop.f32.mrb[0].mxu0
    %v1254 = vadd.f32 0.0, %v1253
    %v1255 = vpop.f32.mrb[0].mxu0
    %1256 = vdwg.mxu0
    %v1257 = vld [vmem:[%s6] sm:$0x1]
    %v1258 = vld [vmem:[%s8] sm:$0x1]
    %v1259 = vld [vmem:[%s8 + $0x1] sm:$0x1]
    %v1260 = vld [vmem:[%s8 + $0x2] sm:$0x1]
    %v1261 = vld [vmem:[%s8 + $0x3] sm:$0x1]
    %v1262 = vadd.f32 %v1257, %v1258
    %v1263 = vadd.f32 %v1257, %v1259
    %v1264 = vadd.f32 %v1257, %v1260
    %v1265 = vadd.f32 %v1257, %v1261
    %v1266 = vadd.f32 %v795, %v984
    %v1267 = vadd.f32 %v800, %v987
    %v1268 = vadd.f32 %v805, %v1073
    %v1269 = vadd.f32 %v810, %v1076
    %v1270 = vadd.f32 %v815, %v1162
    %v1271 = vadd.f32 %v820, %v1165
    %v1272 = vadd.f32 %v825, %v1251
    %v1273 = vadd.f32 %v830, %v1254
    %v1278 = vlaneseq
    %v1279 = vshrl.u32 %v1278, 7
    %v1280 = vsub.s32 0, %v1279
    %v1281 = vrot.slane %v1262, %v1280
    %v1282 = vlaneseq
    %v1283 = vshrl.u32 %v1282, 7
    %v1284 = vsub.s32 0, %v1283
    %v1285 = vrot.slane %v1263, %v1284
    %v1286 = vlaneseq
    %v1287 = vshrl.u32 %v1286, 7
    %v1288 = vsub.s32 0, %v1287
    %v1289 = vrot.slane %v1264, %v1288
    %v1290 = vlaneseq
    %v1291 = vshrl.u32 %v1290, 7
    %v1292 = vsub.s32 0, %v1291
    %v1293 = vrot.slane %v1265, %v1292
    %v1298 = vadd.f32 %v1266, %v1281
    %v1299 = vadd.f32 %v1267, %v1281
    %v1300 = vadd.f32 %v1268, %v1285
    %v1301 = vadd.f32 %v1269, %v1285
    %v1302 = vadd.f32 %v1270, %v1289
    %v1303 = vadd.f32 %v1271, %v1289
    %v1304 = vadd.f32 %v1272, %v1293
    %v1305 = vadd.f32 %v1273, %v1293
    %v1306 = vmax.f32 %v1298, 0.0
    %v1307 = vmax.f32 %v1299, 0.0
    %v1308 = vmax.f32 %v1300, 0.0
    %v1309 = vmax.f32 %v1301, 0.0
    %v1310 = vmax.f32 %v1302, 0.0
    %v1311 = vmax.f32 %v1303, 0.0
    %v1312 = vmax.f32 %v1304, 0.0
    %v1313 = vmax.f32 %v1305, 0.0
    %v1314 = vld [vmem:[#allocation11] sm:$0xff]
    %v1315 = vld [vmem:[#allocation11 + $0x8] sm:$0xff]
    %v1316 = vld [vmem:[#allocation11 + $0x10] sm:$0xff]
    %v1317 = vld [vmem:[#allocation11 + $0x18] sm:$0xff]
    %v1318 = vld [vmem:[#allocation11 + $0x20] sm:$0xff]
    %v1319 = vld [vmem:[#allocation11 + $0x28] sm:$0xff]
    %v1320 = vld [vmem:[#allocation11 + $0x30] sm:$0xff]
    %v1321 = vld [vmem:[#allocation11 + $0x38] sm:$0xff]
    %v1322 = vld [vmem:[#allocation11 + $0x40] sm:$0xff]
    %v1323 = vld [vmem:[#allocation11 + $0x48] sm:$0xff]
    %v1324 = vld [vmem:[#allocation11 + $0x50] sm:$0xff]
    %v1325 = vld [vmem:[#allocation11 + $0x58] sm:$0xff]
    %v1326 = vld [vmem:[#allocation11 + $0x60] sm:$0xff]
    %v1327 = vld [vmem:[#allocation11 + $0x68] sm:$0xff]
    %v1328 = vld [vmem:[#allocation11 + $0x70] sm:$0xff]
    %v1329 = vld [vmem:[#allocation11 + $0x78] sm:$0xff]
    %1330 = vmatprep.subr.mxu0 0.0
    %1331 = vmatpush1.xpose.msra.mxu0 %v1314
    %1332 = vmatprep.subr.mxu0 0.0
    %1333 = vmatpush1.xpose.msra.mxu0 %v1315
    %1334 = vmatprep.subr.mxu0 0.0
    %1335 = vmatpush1.xpose.msra.mxu0 %v1316
    %1336 = vmatprep.subr.mxu0 0.0
    %1337 = vmatpush1.xpose.msra.mxu0 %v1317
    %1338 = vmatprep.subr.mxu0 0.0
    %1339 = vmatpush1.xpose.msra.mxu0 %v1318
    %1340 = vmatprep.subr.mxu0 0.0
    %1341 = vmatpush1.xpose.msra.mxu0 %v1319
    %1342 = vmatprep.subr.mxu0 0.0
    %1343 = vmatpush1.xpose.msra.mxu0 %v1320
    %1344 = vmatprep.subr.mxu0 0.0
    %1345 = vmatpush1.xpose.msra.mxu0 %v1321
    %1346 = vmatprep.subr.mxu0 0.0
    %1347 = vmatpush1.xpose.msra.mxu0 %v1322
    %1348 = vmatprep.subr.mxu0 0.0
    %1349 = vmatpush1.xpose.msra.mxu0 %v1323
    %1350 = vmatprep.subr.mxu0 0.0
    %1351 = vmatpush1.xpose.msra.mxu0 %v1324
    %1352 = vmatprep.subr.mxu0 0.0
    %1353 = vmatpush1.xpose.msra.mxu0 %v1325
    %1354 = vmatprep.subr.mxu0 0.0
    %1355 = vmatpush1.xpose.msra.mxu0 %v1326
    %1356 = vmatprep.subr.mxu0 0.0
    %1357 = vmatpush1.xpose.msra.mxu0 %v1327
    %1358 = vmatprep.subr.mxu0 0.0
    %1359 = vmatpush1.xpose.msra.mxu0 %v1328
    %1360 = vmatprep.subr.mxu0 0.0
    %1361 = vmatpush1.xpose.msra.mxu0 %v1329
    %1362 = vmatprep.subr.mxu0 0.0
    %1363 = vmatpush1.xpose.msra.mxu0 0.0
    %1364 = vmatprep.subr.mxu0 0.0
    %1365 = vmatpush1.xpose.msra.mxu0 0.0
    %1366 = vmatprep.subr.mxu0 0.0
    %1367 = vmatpush1.xpose.msra.mxu0 0.0
    %1368 = vmatprep.subr.mxu0 0.0
    %1369 = vmatpush1.xpose.msra.mxu0 0.0
    %1370 = vmatprep.subr.mxu0 0.0
    %1371 = vmatpush1.xpose.msra.mxu0 0.0
    %1372 = vmatprep.subr.mxu0 0.0
    %1373 = vmatpush1.xpose.msra.mxu0 0.0
    %1374 = vmatprep.subr.mxu0 0.0
    %1375 = vmatpush1.xpose.msra.mxu0 0.0
    %1376 = vmatprep.subr.mxu0 0.0
    %1377 = vmatpush1.xpose.msra.mxu0 0.0
    %1378 = vmatprep.subr.mxu0 0.0
    %1379 = vmatpush1.xpose.msra.mxu0 0.0
    %1380 = vmatprep.subr.mxu0 0.0
    %1381 = vmatpush1.xpose.msra.mxu0 0.0
    %1382 = vmatprep.subr.mxu0 0.0
    %1383 = vmatpush1.xpose.msra.mxu0 0.0
    %1384 = vmatprep.subr.mxu0 0.0
    %1385 = vmatpush1.xpose.msra.mxu0 0.0
    %1386 = vmatprep.subr.mxu0 0.0
    %1387 = vmatpush1.xpose.msra.mxu0 0.0
    %1388 = vmatprep.subr.mxu0 0.0
    %1389 = vmatpush1.xpose.msra.mxu0 0.0
    %1390 = vmatprep.subr.mxu0 0.0
    %1391 = vmatpush1.xpose.msra.mxu0 0.0
    %1392 = vmatprep.subr.mxu0 0.0
    %1393 = vmatpush1.xpose.msra.mxu0 0.0
    %1394 = vmatprep.mubr.f32.mxu0 0.0
    %1395 = vmatmul.mubr.f32.gmra.mrb[0].mxu0 %v1306
    %v1396 = vpop.f32.mrb[0].mxu0
    %v1397 = vadd.f32 0.0, %v1396
    %v1398 = vpop.f32.mrb[0].mxu0
    %1399 = vmatprep.mubr.f32.mxu0 0.0
    %1400 = vmatmul.mubr.f32.gmra.mrb[0].mxu0 %v1307
    %v1401 = vpop.f32.mrb[0].mxu0
    %v1402 = vadd.f32 0.0, %v1401
    %v1403 = vpop.f32.mrb[0].mxu0
    %1404 = vmatprep.mubr.f32.mxu0 0.0
    %1405 = vmatmul.mubr.f32.gmra.mrb[0].mxu0 %v1308
    %v1406 = vpop.f32.mrb[0].mxu0
    %v1407 = vadd.f32 0.0, %v1406
    %v1408 = vpop.f32.mrb[0].mxu0
    %1409 = vmatprep.mubr.f32.mxu0 0.0
    %1410 = vmatmul.mubr.f32.gmra.mrb[0].mxu0 %v1309
    %v1411 = vpop.f32.mrb[0].mxu0
    %v1412 = vadd.f32 0.0, %v1411
    %v1413 = vpop.f32.mrb[0].mxu0
    %1414 = vmatprep.mubr.f32.mxu0 0.0
    %1415 = vmatmul.mubr.f32.gmra.mrb[0].mxu0 %v1310
    %v1416 = vpop.f32.mrb[0].mxu0
    %v1417 = vadd.f32 0.0, %v1416
    %v1418 = vpop.f32.mrb[0].mxu0
    %1419 = vmatprep.mubr.f32.mxu0 0.0
    %1420 = vmatmul.mubr.f32.gmra.mrb[0].mxu0 %v1311
    %v1421 = vpop.f32.mrb[0].mxu0
    %v1422 = vadd.f32 0.0, %v1421
    %v1423 = vpop.f32.mrb[0].mxu0
    %1424 = vmatprep.mubr.f32.mxu0 0.0
    %1425 = vmatmul.mubr.f32.gmra.mrb[0].mxu0 %v1312
    %v1426 = vpop.f32.mrb[0].mxu0
    %v1427 = vadd.f32 0.0, %v1426
    %v1428 = vpop.f32.mrb[0].mxu0
    %1429 = vmatprep.mubr.f32.mxu0 0.0
    %1430 = vmatmul.mubr.f32.gmra.mrb[0].mxu0 %v1313
    %v1431 = vpop.f32.mrb[0].mxu0
    %v1432 = vadd.f32 0.0, %v1431
    %v1433 = vpop.f32.mrb[0].mxu0
    %1434 = vdwg.mxu0
    %v1435 = vpack.c.bf16 %v1307, %v1306
    %v1436 = vpack.c.bf16 %v1309, %v1308
    %v1437 = vpack.c.bf16 %v1311, %v1310
    %v1438 = vpack.c.bf16 %v1313, %v1312
    %v1439 = vld [vmem:[#allocation13] sm:$0xf]
    %v1440 = vld [vmem:[#allocation13 + $0x4] sm:$0xf]
    %v1441 = vld [vmem:[#allocation13 + $0x8] sm:$0xf]
    %v1442 = vld [vmem:[#allocation13 + $0xc] sm:$0xf]
    %v1443 = vld [vmem:[#allocation13 + $0x10] sm:$0xf]
    %v1444 = vld [vmem:[#allocation13 + $0x14] sm:$0xf]
    %v1445 = vld [vmem:[#allocation13 + $0x18] sm:$0xf]
    %v1446 = vld [vmem:[#allocation13 + $0x1c] sm:$0xf]
    %v1447 = vld [vmem:[#allocation13 + $0x20] sm:$0xf]
    %v1448 = vld [vmem:[#allocation13 + $0x24] sm:$0xf]
    %v1449 = vld [vmem:[#allocation13 + $0x28] sm:$0xf]
    %v1450 = vld [vmem:[#allocation13 + $0x2c] sm:$0xf]
    %v1451 = vld [vmem:[#allocation13 + $0x30] sm:$0xf]
    %v1452 = vld [vmem:[#allocation13 + $0x34] sm:$0xf]
    %v1453 = vld [vmem:[#allocation13 + $0x38] sm:$0xf]
    %v1454 = vld [vmem:[#allocation13 + $0x3c] sm:$0xf]
    %v1455 = vld [vmem:[#allocation13 + $0x40] sm:$0xf]
    %v1456 = vld [vmem:[#allocation13 + $0x44] sm:$0xf]
    %v1457 = vld [vmem:[#allocation13 + $0x48] sm:$0xf]
    %v1458 = vld [vmem:[#allocation13 + $0x4c] sm:$0xf]
    %v1459 = vld [vmem:[#allocation13 + $0x50] sm:$0xf]
    %v1460 = vld [vmem:[#allocation13 + $0x54] sm:$0xf]
    %v1461 = vld [vmem:[#allocation13 + $0x58] sm:$0xf]
    %v1462 = vld [vmem:[#allocation13 + $0x5c] sm:$0xf]
    %v1463 = vld [vmem:[#allocation13 + $0x60] sm:$0xf]
    %v1464 = vld [vmem:[#allocation13 + $0x64] sm:$0xf]
    %v1465 = vld [vmem:[#allocation13 + $0x68] sm:$0xf]
    %v1466 = vld [vmem:[#allocation13 + $0x6c] sm:$0xf]
    %v1467 = vld [vmem:[#allocation13 + $0x70] sm:$0xf]
    %v1468 = vld [vmem:[#allocation13 + $0x74] sm:$0xf]
    %v1469 = vld [vmem:[#allocation13 + $0x78] sm:$0xf]
    %v1470 = vld [vmem:[#allocation13 + $0x7c] sm:$0xf]
    %v1471 = vld [vmem:[#allocation13 + $0x80] sm:$0xf]
    %v1472 = vld [vmem:[#allocation13 + $0x84] sm:$0xf]
    %v1473 = vld [vmem:[#allocation13 + $0x88] sm:$0xf]
    %v1474 = vld [vmem:[#allocation13 + $0x8c] sm:$0xf]
    %v1475 = vld [vmem:[#allocation13 + $0x90] sm:$0xf]
    %v1476 = vld [vmem:[#allocation13 + $0x94] sm:$0xf]
    %v1477 = vld [vmem:[#allocation13 + $0x98] sm:$0xf]
    %v1478 = vld [vmem:[#allocation13 + $0x9c] sm:$0xf]
    %v1479 = vld [vmem:[#allocation13 + $0xa0] sm:$0xf]
    %v1480 = vld [vmem:[#allocation13 + $0xa4] sm:$0xf]
    %v1481 = vld [vmem:[#allocation13 + $0xa8] sm:$0xf]
    %v1482 = vld [vmem:[#allocation13 + $0xac] sm:$0xf]
    %v1483 = vld [vmem:[#allocation13 + $0xb0] sm:$0xf]
    %v1484 = vld [vmem:[#allocation13 + $0xb4] sm:$0xf]
    %v1485 = vld [vmem:[#allocation13 + $0xb8] sm:$0xf]
    %v1486 = vld [vmem:[#allocation13 + $0xbc] sm:$0xf]
    %v1487 = vld [vmem:[#allocation13 + $0xc0] sm:$0xf]
    %v1488 = vld [vmem:[#allocation13 + $0xc4] sm:$0xf]
    %v1489 = vld [vmem:[#allocation13 + $0xc8] sm:$0xf]
    %v1490 = vld [vmem:[#allocation13 + $0xcc] sm:$0xf]
    %v1491 = vld [vmem:[#allocation13 + $0xd0] sm:$0xf]
    %v1492 = vld [vmem:[#allocation13 + $0xd4] sm:$0xf]
    %v1493 = vld [vmem:[#allocation13 + $0xd8] sm:$0xf]
    %v1494 = vld [vmem:[#allocation13 + $0xdc] sm:$0xf]
    %v1495 = vld [vmem:[#allocation13 + $0xe0] sm:$0xf]
    %v1496 = vld [vmem:[#allocation13 + $0xe4] sm:$0xf]
    %v1497 = vld [vmem:[#allocation13 + $0xe8] sm:$0xf]
    %v1498 = vld [vmem:[#allocation13 + $0xec] sm:$0xf]
    %v1499 = vld [vmem:[#allocation13 + $0xf0] sm:$0xf]
    %v1500 = vld [vmem:[#allocation13 + $0xf4] sm:$0xf]
    %v1501 = vld [vmem:[#allocation13 + $0xf8] sm:$0xf]
    %v1502 = vld [vmem:[#allocation13 + $0xfc] sm:$0xf]
    %v1519 = vunpack.c.l.b16 %v1439
    %v1520 = vunpack.c.l.b16 %v1440
    %v1521 = vunpack.c.l.b16 %v1441
    %v1522 = vunpack.c.l.b16 %v1442
    %v1523 = vunpack.c.l.b16 %v1443
    %v1524 = vunpack.c.l.b16 %v1444
    %v1525 = vunpack.c.l.b16 %v1445
    %v1526 = vunpack.c.l.b16 %v1446
    %v1527 = vunpack.c.l.b16 %v1447
    %v1528 = vunpack.c.l.b16 %v1448
    %v1529 = vunpack.c.l.b16 %v1449
    %v1530 = vunpack.c.l.b16 %v1450
    %v1531 = vunpack.c.l.b16 %v1451
    %v1532 = vunpack.c.l.b16 %v1452
    %v1533 = vunpack.c.l.b16 %v1453
    %v1534 = vunpack.c.l.b16 %v1454
    %v1535 = vpack.c.b16 %v1520, %v1519
    %v1536 = vpack.c.b16 %v1522, %v1521
    %v1537 = vpack.c.b16 %v1524, %v1523
    %v1538 = vpack.c.b16 %v1526, %v1525
    %v1539 = vpack.c.b16 %v1528, %v1527
    %v1540 = vpack.c.b16 %v1530, %v1529
    %v1541 = vpack.c.b16 %v1532, %v1531
    %v1542 = vpack.c.b16 %v1534, %v1533
    %1551 = vmatprep.subr.bf16.mxu0 0
    %1552 = vmatpush1.bf16.xpose.msra.mxu0 %v1535
    %1553 = vmatprep.subr.bf16.mxu0 0
    %1554 = vmatpush1.bf16.xpose.msra.mxu0 %v1536
    %1555 = vmatprep.subr.bf16.mxu0 0
    %1556 = vmatpush1.bf16.xpose.msra.mxu0 %v1537
    %1557 = vmatprep.subr.bf16.mxu0 0
    %1558 = vmatpush1.bf16.xpose.msra.mxu0 %v1538
    %1559 = vmatprep.subr.bf16.mxu0 0
    %1560 = vmatpush1.bf16.xpose.msra.mxu0 %v1539
    %1561 = vmatprep.subr.bf16.mxu0 0
    %1562 = vmatpush1.bf16.xpose.msra.mxu0 %v1540
    %1563 = vmatprep.subr.bf16.mxu0 0
    %1564 = vmatpush1.bf16.xpose.msra.mxu0 %v1541
    %1565 = vmatprep.subr.bf16.mxu0 0
    %1566 = vmatpush1.bf16.xpose.msra.mxu0 %v1542
    %1567 = vmatprep.subr.bf16.mxu0 0
    %1568 = vmatpush1.bf16.xpose.msra.mxu0 0
    %1569 = vmatprep.subr.bf16.mxu0 0
    %1570 = vmatpush1.bf16.xpose.msra.mxu0 0
    %1571 = vmatprep.subr.bf16.mxu0 0
    %1572 = vmatpush1.bf16.xpose.msra.mxu0 0
    %1573 = vmatprep.subr.bf16.mxu0 0
    %1574 = vmatpush1.bf16.xpose.msra.mxu0 0
    %1575 = vmatprep.subr.bf16.mxu0 0
    %1576 = vmatpush1.bf16.xpose.msra.mxu0 0
    %1577 = vmatprep.subr.bf16.mxu0 0
    %1578 = vmatpush1.bf16.xpose.msra.mxu0 0
    %1579 = vmatprep.subr.bf16.mxu0 0
    %1580 = vmatpush1.bf16.xpose.msra.mxu0 0
    %1581 = vmatprep.subr.bf16.mxu0 0
    %1582 = vmatpush1.bf16.xpose.msra.mxu0 0
    %1583 = vmatprep.mubr.bf16.mxu0 0
    %1584 = vmatmul.mubr.bf16.gmra.mrb[0].mxu0 %v1435
    %v1585 = vpop.f32.mrb[0].mxu0
    %v1586 = vadd.f32 0.0, %v1585
    %v1587 = vpop.f32.mrb[0].mxu0
    %v1588 = vpop.f32.mrb[0].mxu0
    %v1589 = vadd.f32 0.0, %v1588
    %v1590 = vpop.f32.mrb[0].mxu0
    %1591 = vdwg.mxu0
    %v1608 = vunpack.c.l.b16 %v1455
    %v1609 = vunpack.c.l.b16 %v1456
    %v1610 = vunpack.c.l.b16 %v1457
    %v1611 = vunpack.c.l.b16 %v1458
    %v1612 = vunpack.c.l.b16 %v1459
    %v1613 = vunpack.c.l.b16 %v1460
    %v1614 = vunpack.c.l.b16 %v1461
    %v1615 = vunpack.c.l.b16 %v1462
    %v1616 = vunpack.c.l.b16 %v1463
    %v1617 = vunpack.c.l.b16 %v1464
    %v1618 = vunpack.c.l.b16 %v1465
    %v1619 = vunpack.c.l.b16 %v1466
    %v1620 = vunpack.c.l.b16 %v1467
    %v1621 = vunpack.c.l.b16 %v1468
    %v1622 = vunpack.c.l.b16 %v1469
    %v1623 = vunpack.c.l.b16 %v1470
    %v1624 = vpack.c.b16 %v1609, %v1608
    %v1625 = vpack.c.b16 %v1611, %v1610
    %v1626 = vpack.c.b16 %v1613, %v1612
    %v1627 = vpack.c.b16 %v1615, %v1614
    %v1628 = vpack.c.b16 %v1617, %v1616
    %v1629 = vpack.c.b16 %v1619, %v1618
    %v1630 = vpack.c.b16 %v1621, %v1620
    %v1631 = vpack.c.b16 %v1623, %v1622
    %1640 = vmatprep.subr.bf16.mxu0 0
    %1641 = vmatpush1.bf16.xpose.msra.mxu0 %v1624
    %1642 = vmatprep.subr.bf16.mxu0 0
    %1643 = vmatpush1.bf16.xpose.msra.mxu0 %v1625
    %1644 = vmatprep.subr.bf16.mxu0 0
    %1645 = vmatpush1.bf16.xpose.msra.mxu0 %v1626
    %1646 = vmatprep.subr.bf16.mxu0 0
    %1647 = vmatpush1.bf16.xpose.msra.mxu0 %v1627
    %1648 = vmatprep.subr.bf16.mxu0 0
    %1649 = vmatpush1.bf16.xpose.msra.mxu0 %v1628
    %1650 = vmatprep.subr.bf16.mxu0 0
    %1651 = vmatpush1.bf16.xpose.msra.mxu0 %v1629
    %1652 = vmatprep.subr.bf16.mxu0 0
    %1653 = vmatpush1.bf16.xpose.msra.mxu0 %v1630
    %1654 = vmatprep.subr.bf16.mxu0 0
    %1655 = vmatpush1.bf16.xpose.msra.mxu0 %v1631
    %1656 = vmatprep.subr.bf16.mxu0 0
    %1657 = vmatpush1.bf16.xpose.msra.mxu0 0
    %1658 = vmatprep.subr.bf16.mxu0 0
    %1659 = vmatpush1.bf16.xpose.msra.mxu0 0
    %1660 = vmatprep.subr.bf16.mxu0 0
    %1661 = vmatpush1.bf16.xpose.msra.mxu0 0
    %1662 = vmatprep.subr.bf16.mxu0 0
    %1663 = vmatpush1.bf16.xpose.msra.mxu0 0
    %1664 = vmatprep.subr.bf16.mxu0 0
    %1665 = vmatpush1.bf16.xpose.msra.mxu0 0
    %1666 = vmatprep.subr.bf16.mxu0 0
    %1667 = vmatpush1.bf16.xpose.msra.mxu0 0
    %1668 = vmatprep.subr.bf16.mxu0 0
    %1669 = vmatpush1.bf16.xpose.msra.mxu0 0
    %1670 = vmatprep.subr.bf16.mxu0 0
    %1671 = vmatpush1.bf16.xpose.msra.mxu0 0
    %1672 = vmatprep.mubr.bf16.mxu0 0
    %1673 = vmatmul.mubr.bf16.gmra.mrb[0].mxu0 %v1436
    %v1674 = vpop.f32.mrb[0].mxu0
    %v1675 = vadd.f32 0.0, %v1674
    %v1676 = vpop.f32.mrb[0].mxu0
    %v1677 = vpop.f32.mrb[0].mxu0
    %v1678 = vadd.f32 0.0, %v1677
    %v1679 = vpop.f32.mrb[0].mxu0
    %1680 = vdwg.mxu0
    %v1697 = vunpack.c.l.b16 %v1471
    %v1698 = vunpack.c.l.b16 %v1472
    %v1699 = vunpack.c.l.b16 %v1473
    %v1700 = vunpack.c.l.b16 %v1474
    %v1701 = vunpack.c.l.b16 %v1475
    %v1702 = vunpack.c.l.b16 %v1476
    %v1703 = vunpack.c.l.b16 %v1477
    %v1704 = vunpack.c.l.b16 %v1478
    %v1705 = vunpack.c.l.b16 %v1479
    %v1706 = vunpack.c.l.b16 %v1480
    %v1707 = vunpack.c.l.b16 %v1481
    %v1708 = vunpack.c.l.b16 %v1482
    %v1709 = vunpack.c.l.b16 %v1483
    %v1710 = vunpack.c.l.b16 %v1484
    %v1711 = vunpack.c.l.b16 %v1485
    %v1712 = vunpack.c.l.b16 %v1486
    %v1713 = vpack.c.b16 %v1698, %v1697
    %v1714 = vpack.c.b16 %v1700, %v1699
    %v1715 = vpack.c.b16 %v1702, %v1701
    %v1716 = vpack.c.b16 %v1704, %v1703
    %v1717 = vpack.c.b16 %v1706, %v1705
    %v1718 = vpack.c.b16 %v1708, %v1707
    %v1719 = vpack.c.b16 %v1710, %v1709
    %v1720 = vpack.c.b16 %v1712, %v1711
    %1729 = vmatprep.subr.bf16.mxu0 0
    %1730 = vmatpush1.bf16.xpose.msra.mxu0 %v1713
    %1731 = vmatprep.subr.bf16.mxu0 0
    %1732 = vmatpush1.bf16.xpose.msra.mxu0 %v1714
    %1733 = vmatprep.subr.bf16.mxu0 0
    %1734 = vmatpush1.bf16.xpose.msra.mxu0 %v1715
    %1735 = vmatprep.subr.bf16.mxu0 0
    %1736 = vmatpush1.bf16.xpose.msra.mxu0 %v1716
    %1737 = vmatprep.subr.bf16.mxu0 0
    %1738 = vmatpush1.bf16.xpose.msra.mxu0 %v1717
    %1739 = vmatprep.subr.bf16.mxu0 0
    %1740 = vmatpush1.bf16.xpose.msra.mxu0 %v1718
    %1741 = vmatprep.subr.bf16.mxu0 0
    %1742 = vmatpush1.bf16.xpose.msra.mxu0 %v1719
    %1743 = vmatprep.subr.bf16.mxu0 0
    %1744 = vmatpush1.bf16.xpose.msra.mxu0 %v1720
    %1745 = vmatprep.subr.bf16.mxu0 0
    %1746 = vmatpush1.bf16.xpose.msra.mxu0 0
    %1747 = vmatprep.subr.bf16.mxu0 0
    %1748 = vmatpush1.bf16.xpose.msra.mxu0 0
    %1749 = vmatprep.subr.bf16.mxu0 0
    %1750 = vmatpush1.bf16.xpose.msra.mxu0 0
    %1751 = vmatprep.subr.bf16.mxu0 0
    %1752 = vmatpush1.bf16.xpose.msra.mxu0 0
    %1753 = vmatprep.subr.bf16.mxu0 0
    %1754 = vmatpush1.bf16.xpose.msra.mxu0 0
    %1755 = vmatprep.subr.bf16.mxu0 0
    %1756 = vmatpush1.bf16.xpose.msra.mxu0 0
    %1757 = vmatprep.subr.bf16.mxu0 0
    %1758 = vmatpush1.bf16.xpose.msra.mxu0 0
    %1759 = vmatprep.subr.bf16.mxu0 0
    %1760 = vmatpush1.bf16.xpose.msra.mxu0 0
    %1761 = vmatprep.mubr.bf16.mxu0 0
    %1762 = vmatmul.mubr.bf16.gmra.mrb[0].mxu0 %v1437
    %v1763 = vpop.f32.mrb[0].mxu0
    %v1764 = vadd.f32 0.0, %v1763
    %v1765 = vpop.f32.mrb[0].mxu0
    %v1766 = vpop.f32.mrb[0].mxu0
    %v1767 = vadd.f32 0.0, %v1766
    %v1768 = vpop.f32.mrb[0].mxu0
    %1769 = vdwg.mxu0
    %v1786 = vunpack.c.l.b16 %v1487
    %v1787 = vunpack.c.l.b16 %v1488
    %v1788 = vunpack.c.l.b16 %v1489
    %v1789 = vunpack.c.l.b16 %v1490
    %v1790 = vunpack.c.l.b16 %v1491
    %v1791 = vunpack.c.l.b16 %v1492
    %v1792 = vunpack.c.l.b16 %v1493
    %v1793 = vunpack.c.l.b16 %v1494
    %v1794 = vunpack.c.l.b16 %v1495
    %v1795 = vunpack.c.l.b16 %v1496
    %v1796 = vunpack.c.l.b16 %v1497
    %v1797 = vunpack.c.l.b16 %v1498
    %v1798 = vunpack.c.l.b16 %v1499
    %v1799 = vunpack.c.l.b16 %v1500
    %v1800 = vunpack.c.l.b16 %v1501
    %v1801 = vunpack.c.l.b16 %v1502
    %v1802 = vpack.c.b16 %v1787, %v1786
    %v1803 = vpack.c.b16 %v1789, %v1788
    %v1804 = vpack.c.b16 %v1791, %v1790
    %v1805 = vpack.c.b16 %v1793, %v1792
    %v1806 = vpack.c.b16 %v1795, %v1794
    %v1807 = vpack.c.b16 %v1797, %v1796
    %v1808 = vpack.c.b16 %v1799, %v1798
    %v1809 = vpack.c.b16 %v1801, %v1800
    %1818 = vmatprep.subr.bf16.mxu0 0
    %1819 = vmatpush1.bf16.xpose.msra.mxu0 %v1802
    %1820 = vmatprep.subr.bf16.mxu0 0
    %1821 = vmatpush1.bf16.xpose.msra.mxu0 %v1803
    %1822 = vmatprep.subr.bf16.mxu0 0
    %1823 = vmatpush1.bf16.xpose.msra.mxu0 %v1804
    %1824 = vmatprep.subr.bf16.mxu0 0
    %1825 = vmatpush1.bf16.xpose.msra.mxu0 %v1805
    %1826 = vmatprep.subr.bf16.mxu0 0
    %1827 = vmatpush1.bf16.xpose.msra.mxu0 %v1806
    %1828 = vmatprep.subr.bf16.mxu0 0
    %1829 = vmatpush1.bf16.xpose.msra.mxu0 %v1807
    %1830 = vmatprep.subr.bf16.mxu0 0
    %1831 = vmatpush1.bf16.xpose.msra.mxu0 %v1808
    %1832 = vmatprep.subr.bf16.mxu0 0
    %1833 = vmatpush1.bf16.xpose.msra.mxu0 %v1809
    %1834 = vmatprep.subr.bf16.mxu0 0
    %1835 = vmatpush1.bf16.xpose.msra.mxu0 0
    %1836 = vmatprep.subr.bf16.mxu0 0
    %1837 = vmatpush1.bf16.xpose.msra.mxu0 0
    %1838 = vmatprep.subr.bf16.mxu0 0
    %1839 = vmatpush1.bf16.xpose.msra.mxu0 0
    %1840 = vmatprep.subr.bf16.mxu0 0
    %1841 = vmatpush1.bf16.xpose.msra.mxu0 0
    %1842 = vmatprep.subr.bf16.mxu0 0
    %1843 = vmatpush1.bf16.xpose.msra.mxu0 0
    %1844 = vmatprep.subr.bf16.mxu0 0
    %1845 = vmatpush1.bf16.xpose.msra.mxu0 0
    %1846 = vmatprep.subr.bf16.mxu0 0
    %1847 = vmatpush1.bf16.xpose.msra.mxu0 0
    %1848 = vmatprep.subr.bf16.mxu0 0
    %1849 = vmatpush1.bf16.xpose.msra.mxu0 0
    %1850 = vmatprep.mubr.bf16.mxu0 0
    %1851 = vmatmul.mubr.bf16.gmra.mrb[0].mxu0 %v1438
    %v1852 = vpop.f32.mrb[0].mxu0
    %v1853 = vadd.f32 0.0, %v1852
    %v1854 = vpop.f32.mrb[0].mxu0
    %v1855 = vpop.f32.mrb[0].mxu0
    %v1856 = vadd.f32 0.0, %v1855
    %v1857 = vpop.f32.mrb[0].mxu0
    %1858 = vdwg.mxu0
    %v1859 = vld [vmem:[%s10] sm:$0x1]
    %v1860 = vld [vmem:[%s12] sm:$0x1]
    %v1861 = vld [vmem:[%s12 + $0x1] sm:$0x1]
    %v1862 = vld [vmem:[%s12 + $0x2] sm:$0x1]
    %v1863 = vld [vmem:[%s12 + $0x3] sm:$0x1]
    %v1864 = vadd.f32 %v1859, %v1860
    %v1865 = vadd.f32 %v1859, %v1861
    %v1866 = vadd.f32 %v1859, %v1862
    %v1867 = vadd.f32 %v1859, %v1863
    %v1868 = vadd.f32 %v1397, %v1586
    %v1869 = vadd.f32 %v1402, %v1589
    %v1870 = vadd.f32 %v1407, %v1675
    %v1871 = vadd.f32 %v1412, %v1678
    %v1872 = vadd.f32 %v1417, %v1764
    %v1873 = vadd.f32 %v1422, %v1767
    %v1874 = vadd.f32 %v1427, %v1853
    %v1875 = vadd.f32 %v1432, %v1856
    %v1880 = vlaneseq
    %v1881 = vshrl.u32 %v1880, 7
    %v1882 = vsub.s32 0, %v1881
    %v1883 = vrot.slane %v1864, %v1882
    %v1884 = vlaneseq
    %v1885 = vshrl.u32 %v1884, 7
    %v1886 = vsub.s32 0, %v1885
    %v1887 = vrot.slane %v1865, %v1886
    %v1888 = vlaneseq
    %v1889 = vshrl.u32 %v1888, 7
    %v1890 = vsub.s32 0, %v1889
    %v1891 = vrot.slane %v1866, %v1890
    %v1892 = vlaneseq
    %v1893 = vshrl.u32 %v1892, 7
    %v1894 = vsub.s32 0, %v1893
    %v1895 = vrot.slane %v1867, %v1894
    %v1900 = vadd.f32 %v1868, %v1883
    %v1901 = vadd.f32 %v1869, %v1883
    %v1902 = vadd.f32 %v1870, %v1887
    %v1903 = vadd.f32 %v1871, %v1887
    %v1904 = vadd.f32 %v1872, %v1891
    %v1905 = vadd.f32 %v1873, %v1891
    %v1906 = vadd.f32 %v1874, %v1895
    %v1907 = vadd.f32 %v1875, %v1895
    %1908 = vst [vmem:[#allocation14] sm:$0xff] %v1900
    %1909 = vst [vmem:[#allocation14 + $0x8] sm:$0xff] %v1901
    %1910 = vst [vmem:[#allocation14 + $0x10] sm:$0xff] %v1902
    %1911 = vst [vmem:[#allocation14 + $0x18] sm:$0xff] %v1903
    %1912 = vst [vmem:[#allocation14 + $0x20] sm:$0xff] %v1904
    %1913 = vst [vmem:[#allocation14 + $0x28] sm:$0xff] %v1905
    %1914 = vst [vmem:[#allocation14 + $0x30] sm:$0xff] %v1906
    %1915 = vst [vmem:[#allocation14 + $0x38] sm:$0xff] %v1907
    // Predicated region
    $region82: #{tpu_custom_call.1} parent=1 // pred_check
      _
    $region83: #{tpu_custom_call.1} parent=1 // pred_check_branch
      %1917 = sbr.rel (0) target = $region85
    $region84: #{tpu_custom_call.1} parent=1 // pred_region
      %s1919 = ssub.s32 1024, 1024
      %1920 = vsyncadd [#allocation4], %s1919
      %s1921 = sshll.u32 [#allocation14], 4
      %s1922 = int_to_ptr.vmem [resolvable:$true] %s1921
      %1927 = dma.vmem_to_hbm [thread:$0]  %s1922, 1024, %s13, [#allocation4], 128, 128, 8
    $region85: #{tpu_custom_call.1} parent=1 // pred_fallthru
      _
    // Predicated region
    $region86: #{tpu_custom_call.1} parent=1 // pred_check
      _
    $region87: #{tpu_custom_call.1} parent=1 // pred_check_branch
      %1929 = sbr.rel (0) target = $region89
    $region88: #{tpu_custom_call.1} parent=1 // pred_region
      %1930 = dma.done [#allocation4], 1024
    $region89: #{tpu_custom_call.1} parent=1 // pred_fallthru
      _
    %1931 = vsyncpa [#allocation3], 1
    %1932 = vsyncpa [#allocation6], 1
    %1933 = vsyncpa [#allocation9], 1
    %1934 = vsyncpa [#allocation12], 1
    %1935 = vsyncpa [#allocation4], 1

</llo_original>
